<compile_context>
chip_gen: v7x
topology: tpu7x:2x2x1
jax: 0.10.0
libtpu: 0.0.40
codegen_flags: <defaults>
</compile_context>

<pallas_src>
import functools

import jax
import jax.numpy as jnp
from jax.experimental import pallas as pl
from jax.experimental.pallas import tpu as pltpu


def _attention_kernel(x_ref, wqkv_ref, wproj_ref, bproj_ref, o_ref, *,
                      num_heads, head_dim, block_b, tokens):
    """One grid step: `block_b` window elements (G), all of their tokens.

    x_ref:     (G*N, C)   bf16  -- flattened row slab
    wqkv_ref:  (C, 3C)    bf16  -- Q columns pre-scaled by head_dim**-0.5
    wproj_ref: (C, C)     bf16
    bproj_ref: (1, C)     f32
    o_ref:     (G*N, C)   out dtype
    """
    G, N, H, hd = block_b, tokens, num_heads, head_dim
    T = G * N
    C = H * hd

    x = x_ref[...]                                                   # (T, C) bf16
    # Fused QKV projection: one full-width (K = C) MXU GEMM over the row slab,
    # f32 accumulation, then downcast to bf16 ONCE before any head slicing.
    qkv = jnp.dot(x, wqkv_ref[...],
                  preferred_element_type=jnp.float32)                # (T, 3C) f32
    qkv = qkv.astype(jnp.bfloat16)                                   # (T, 3C) bf16

    # PyTorch column layout along the 3C axis is [3, H, hd]:
    #   q = [:, 0:C], k = [:, C:2C], v = [:, 2C:3C];
    #   head h occupies columns h*hd:(h+1)*hd of each block.
    # Gather all heads into ONE (H*G, N, hd) batch (h-major) so scores / softmax /
    # PV run as single head-batched ops instead of an unrolled per-head loop.
    def split_heads(base):
        parts = [qkv[:, base + h * hd: base + (h + 1) * hd] for h in range(H)]
        return jnp.stack(parts, axis=0).reshape(H * G, N, hd)        # (H*G, N, hd)

    q = split_heads(0)            # scale already folded into wqkv's Q columns
    k = split_heads(C)
    v = split_heads(2 * C)

    # Scores batched over all (head, window-element) pairs.
    s = jnp.einsum('bnd,bmd->bnm', q, k,
                   preferred_element_type=jnp.float32)               # (H*G, N, N) f32
    # Numerically-stable softmax over keys (matches torch.softmax(dim=-1)).
    s = s - jnp.max(s, axis=-1, keepdims=True)
    p = jnp.exp(s)
    # TODO(synk): switch to an exact divide (approx=False) if this kernel ever
    # feeds training / a backward pass; approx reciprocal is fine for inference.
    p = p * pl.reciprocal(jnp.sum(p, axis=-1, keepdims=True), approx=True)

    o = jnp.einsum('bnm,bmd->bnd', p.astype(jnp.bfloat16), v,
                   preferred_element_type=jnp.float32)               # (H*G, N, hd) f32

    # Re-assemble the head-concatenated (T, C) layout (== out.transpose(1,2)
    # .reshape(B, N, C) in the PyTorch code) and run the output projection as a
    # SINGLE full-width (K = C) GEMM.
    o = o.astype(jnp.bfloat16).reshape(H, T, hd)
    o_cat = jnp.concatenate([o[h] for h in range(H)], axis=-1)       # (T, C) bf16
    out = jnp.dot(o_cat, wproj_ref[...],
                  preferred_element_type=jnp.float32)                # (T, C) f32
    o_ref[...] = (out + bproj_ref[...]).astype(o_ref.dtype)


def _choose_block_b(B, N, max_rows=1024):
    """Window elements per grid step.

    - If the whole batch fits in one row slab, take it (v5e/v6e are single-TC,
      so extra grid steps are pure per-step DMA/setup overhead).
    - Otherwise pick the largest divisor of B with block_b*N <= max_rows,
      preferring an even number of grid steps so v7x's two TensorCores stay
      load-balanced.
    """
    if B * N <= max_rows:
        return B
    divs = [g for g in range(1, B + 1) if B % g == 0 and g * N <= max_rows]
    even = [g for g in divs if (B // g) % 2 == 0]
    pool = even or divs or [1]
    return max(pool)


def attention_forward(x, w_qkv, w_proj, b_proj, *, num_heads, block_b=None,
                      out_dtype=None, vmem_limit_bytes=64 * 1024 * 1024):
    """x: (B, N, C). Returns (B, N, C) in out_dtype (default: x.dtype)."""
    B, N, C = x.shape
    assert C % num_heads == 0
    head_dim = C // num_heads
    scale = head_dim ** (-0.5)
    if out_dtype is None:
        out_dtype = x.dtype

    if block_b is None:
        block_b = _choose_block_b(B, N)
    assert B % block_b == 0
    rows = block_b * N
    # Sublane alignment of the row slab (bf16 prefers multiples of 16; common ViT
    # window token counts like 7*7=49 need token padding before this kernel).
    assert rows % 8 == 0, "row slab must be sublane aligned"
    grid_b = B // block_b

    # bf16 matmul inputs (f32 accumulation in-kernel) halve HBM traffic.
    # Fold the attention scale into the Q columns of the fused QKV weight:
    # zero in-kernel cost, numerically identical at bf16 weight precision.
    wqkv = w_qkv.astype(jnp.float32).at[:, :C].multiply(scale).astype(jnp.bfloat16)
    wproj = w_proj.astype(jnp.bfloat16)
    bproj = b_proj.reshape(1, C).astype(jnp.float32)
    x2 = x.reshape(B * N, C).astype(jnp.bfloat16)
    # TODO(synk): optional fp8 (v7x) / int8 (v6e) weight quantization of wqkv/wproj
    # for ~2x MXU throughput would go here if model accuracy allows.

    kernel = functools.partial(
        _attention_kernel, num_heads=num_heads, head_dim=head_dim,
        block_b=block_b, tokens=N)

    out2 = pl.pallas_call(
        kernel,
        out_shape=jax.ShapeDtypeStruct((B * N, C), out_dtype),
        grid_spec=pltpu.PrefetchScalarGridSpec(
            num_scalar_prefetch=0,
            grid=(grid_b,),
            in_specs=[
                pl.BlockSpec((rows, C), lambda b: (b, 0)),
                # Weights/bias: constant index_map -> fetched once, resident in VMEM.
                # TODO(synk): on v7x, single-buffer these (pipeline_mode=pl.Buffered(1))
                # to halve their resident VMEM at production C=768.
                pl.BlockSpec((C, 3 * C), lambda b: (0, 0)),
                pl.BlockSpec((C, C), lambda b: (0, 0)),
                pl.BlockSpec((1, C), lambda b: (0, 0)),
            ],
            out_specs=pl.BlockSpec((rows, C), lambda b: (b, 0)),
        ),
        compiler_params=pltpu.CompilerParams(
            dimension_semantics=("parallel",),
            vmem_limit_bytes=vmem_limit_bytes,
        ),
    )(x2, wqkv, wproj, bproj)

    return out2.reshape(B, N, C)


def attention_reference(x, w_qkv, w_proj, b_proj, *, num_heads):
    """Pure-JAX f32 reference mirroring the PyTorch forward exactly."""
    B, N, C = x.shape
    hd = C // num_heads
    scale = hd ** (-0.5)
    qkv = jnp.einsum('bnc,cd->bnd', x, w_qkv)                    # (B, N, 3C)
    qkv = qkv.reshape(B, N, 3, num_heads, hd).transpose(2, 0, 3, 1, 4)
    q, k, v = qkv[0], qkv[1], qkv[2]                             # (B, H, N, hd)
    attn = jnp.einsum('bhqd,bhkd->bhqk', q, k) * scale
    attn = jax.nn.softmax(attn, axis=-1)
    out = jnp.einsum('bhqk,bhkd->bhqd', attn, v)                 # (B, H, N, hd)
    out = out.transpose(0, 2, 1, 3).reshape(B, N, C)
    return jnp.einsum('bnc,cd->bnd', out, w_proj) + b_proj.reshape(1, C)


if __name__ == "__main__":
    # Shapes consistent with the module: window_size=(4,4) -> N=16 tokens,
    # cls_token=0, pos_embed='none', C=32, num_heads=4 -> head_dim=8, B=8.
    B, N, C, H = 8, 16, 32, 4

    key = jax.random.PRNGKey(0)
    kx, kqkv, kproj, kb = jax.random.split(key, 4)

    x = jax.random.normal(kx, (B, N, C), dtype=jnp.float32)
    # qkv has no bias (qkv_bias=False); proj has a bias as in nn.Linear default.
    w_qkv = jax.random.normal(kqkv, (C, 3 * C), dtype=jnp.float32) * 0.02
    w_proj = jax.random.normal(kproj, (C, C), dtype=jnp.float32) * 0.02
    b_proj = jax.random.normal(kb, (C,), dtype=jnp.float32) * 0.02

    # block_b=2 -> a 4-step "parallel" grid (exercises the pipelined multi-step
    # path and keeps the step count even for v7x's two TensorCores).
    out = attention_forward(x, w_qkv, w_proj, b_proj, num_heads=H, block_b=2)
    out = jax.block_until_ready(out)

    ref = attention_reference(x, w_qkv, w_proj, b_proj, num_heads=H)
    ref = jax.block_until_ready(ref)

    assert out.shape == (B, N, C)
    # bf16 matmul inputs (f32 accumulation) -> loosened tolerance.
    assert jnp.allclose(out, ref, atol=2e-2, rtol=2e-2), (
        f"max abs err {jnp.max(jnp.abs(out - ref))}")

    print("KERNEL_OK")
</pallas_src>

<mosaic_0001>
module attributes {stable_mosaic.version = 11 : i64} {
  func.func @_attention_kernel(%arg0: i32, %arg1: memref<32x32xbf16, #tpu.memory_space<vmem>>, %arg2: memref<32x96xbf16, #tpu.memory_space<vmem>>, %arg3: memref<32x32xbf16, #tpu.memory_space<vmem>>, %arg4: memref<1x32xf32, #tpu.memory_space<vmem>>, %arg5: memref<32x32xf32, #tpu.memory_space<vmem>>) attributes {dimension_semantics = [#tpu.dimension_semantics<parallel>], iteration_bounds = array<i64: 4>, scalar_prefetch = 0 : i64, scratch_operands = 0 : i64, tpu.core_type = #tpu.core_type<tc>, window_params = [{transform_indices = @transform_0, window_bounds = array<i64: 32, 32>}, {pipeline_mode = #tpu.pipeline_mode<synchronous>, transform_indices = @transform_1, window_bounds = array<i64: 32, 96>}, {pipeline_mode = #tpu.pipeline_mode<synchronous>, transform_indices = @transform_2, window_bounds = array<i64: 32, 32>}, {pipeline_mode = #tpu.pipeline_mode<synchronous>, transform_indices = @transform_3, window_bounds = array<i64: 1, 32>}, {transform_indices = @transform_4, window_bounds = array<i64: 32, 32>}]} {
    %c0 = arith.constant 0 : index
    %c0_0 = arith.constant 0 : index
    %0 = vector.load %arg1[%c0, %c0_0] : memref<32x32xbf16, #tpu.memory_space<vmem>>, vector<32x32xbf16>
    %c0_1 = arith.constant 0 : index
    %c0_2 = arith.constant 0 : index
    %1 = vector.load %arg2[%c0_1, %c0_2] : memref<32x96xbf16, #tpu.memory_space<vmem>>, vector<32x96xbf16>
    %cst = arith.constant dense<0.000000e+00> : vector<32x96xf32>
    %2 = tpu.matmul %0, %1, %cst {dimension_numbers = #tpu.dot_dimension_numbers<[1], [0], [0], [1], [0, 0, 1, 1], [], []>} : vector<32x32xbf16>, vector<32x96xbf16>, vector<32x96xf32> -> vector<32x96xf32>
    %3 = arith.truncf %2 : vector<32x96xf32> to vector<32x96xbf16>
    %4 = vector.extract_strided_slice %3 {offsets = [0, 0], sizes = [32, 8], strides = [1, 1]} : vector<32x96xbf16> to vector<32x8xbf16>
    %5 = vector.extract_strided_slice %3 {offsets = [0, 8], sizes = [32, 8], strides = [1, 1]} : vector<32x96xbf16> to vector<32x8xbf16>
    %6 = vector.extract_strided_slice %3 {offsets = [0, 16], sizes = [32, 8], strides = [1, 1]} : vector<32x96xbf16> to vector<32x8xbf16>
    %7 = vector.extract_strided_slice %3 {offsets = [0, 24], sizes = [32, 8], strides = [1, 1]} : vector<32x96xbf16> to vector<32x8xbf16>
    %8 = vector.shape_cast %4 : vector<32x8xbf16> to vector<1x32x8xbf16>
    %9 = vector.shape_cast %5 : vector<32x8xbf16> to vector<1x32x8xbf16>
    %10 = vector.shape_cast %6 : vector<32x8xbf16> to vector<1x32x8xbf16>
    %11 = vector.shape_cast %7 : vector<32x8xbf16> to vector<1x32x8xbf16>
    %12 = tpu.concatenate %8, %9, %10, %11 in 0 : vector<1x32x8xbf16>, vector<1x32x8xbf16>, vector<1x32x8xbf16>, vector<1x32x8xbf16> -> vector<4x32x8xbf16>
    %13 = vector.shape_cast %12 : vector<4x32x8xbf16> to vector<8x16x8xbf16>
    %14 = vector.extract_strided_slice %3 {offsets = [0, 32], sizes = [32, 8], strides = [1, 1]} : vector<32x96xbf16> to vector<32x8xbf16>
    %15 = vector.extract_strided_slice %3 {offsets = [0, 40], sizes = [32, 8], strides = [1, 1]} : vector<32x96xbf16> to vector<32x8xbf16>
    %16 = vector.extract_strided_slice %3 {offsets = [0, 48], sizes = [32, 8], strides = [1, 1]} : vector<32x96xbf16> to vector<32x8xbf16>
    %17 = vector.extract_strided_slice %3 {offsets = [0, 56], sizes = [32, 8], strides = [1, 1]} : vector<32x96xbf16> to vector<32x8xbf16>
    %18 = vector.shape_cast %14 : vector<32x8xbf16> to vector<1x32x8xbf16>
    %19 = vector.shape_cast %15 : vector<32x8xbf16> to vector<1x32x8xbf16>
    %20 = vector.shape_cast %16 : vector<32x8xbf16> to vector<1x32x8xbf16>
    %21 = vector.shape_cast %17 : vector<32x8xbf16> to vector<1x32x8xbf16>
    %22 = tpu.concatenate %18, %19, %20, %21 in 0 : vector<1x32x8xbf16>, vector<1x32x8xbf16>, vector<1x32x8xbf16>, vector<1x32x8xbf16> -> vector<4x32x8xbf16>
    %23 = vector.shape_cast %22 : vector<4x32x8xbf16> to vector<8x16x8xbf16>
    %24 = vector.extract_strided_slice %3 {offsets = [0, 64], sizes = [32, 8], strides = [1, 1]} : vector<32x96xbf16> to vector<32x8xbf16>
    %25 = vector.extract_strided_slice %3 {offsets = [0, 72], sizes = [32, 8], strides = [1, 1]} : vector<32x96xbf16> to vector<32x8xbf16>
    %26 = vector.extract_strided_slice %3 {offsets = [0, 80], sizes = [32, 8], strides = [1, 1]} : vector<32x96xbf16> to vector<32x8xbf16>
    %27 = vector.extract_strided_slice %3 {offsets = [0, 88], sizes = [32, 8], strides = [1, 1]} : vector<32x96xbf16> to vector<32x8xbf16>
    %28 = vector.shape_cast %24 : vector<32x8xbf16> to vector<1x32x8xbf16>
    %29 = vector.shape_cast %25 : vector<32x8xbf16> to vector<1x32x8xbf16>
    %30 = vector.shape_cast %26 : vector<32x8xbf16> to vector<1x32x8xbf16>
    %31 = vector.shape_cast %27 : vector<32x8xbf16> to vector<1x32x8xbf16>
    %32 = tpu.concatenate %28, %29, %30, %31 in 0 : vector<1x32x8xbf16>, vector<1x32x8xbf16>, vector<1x32x8xbf16>, vector<1x32x8xbf16> -> vector<4x32x8xbf16>
    %33 = vector.shape_cast %32 : vector<4x32x8xbf16> to vector<8x16x8xbf16>
    "tpu.trace_start"() <{level = 10 : i32, message = "bnd,bmd->bnm"}> : () -> ()
    %cst_3 = arith.constant dense<0.000000e+00> : vector<8x16x16xf32>
    %34 = tpu.matmul %13, %23, %cst_3 {dimension_numbers = #tpu.dot_dimension_numbers<[2], [2], [1], [1], [0, 0, 0, 1, 1, 1], [0], [0]>} : vector<8x16x8xbf16>, vector<8x16x8xbf16>, vector<8x16x16xf32> -> vector<8x16x16xf32>
    "tpu.trace_stop"() : () -> ()
    %cst_4 = arith.constant dense<0xFF800000> : vector<8x16xf32>
    %35 = vector.multi_reduction <maximumf>, %34, %cst_4 [2] : vector<8x16x16xf32> to vector<8x16xf32>
    %36 = vector.shape_cast %35 : vector<8x16xf32> to vector<8x16x1xf32>
    %37 = vector.broadcast %36 : vector<8x16x1xf32> to vector<8x16x16xf32>
    %38 = arith.subf %34, %37 : vector<8x16x16xf32>
    %39 = math.exp %38 : vector<8x16x16xf32>
    %cst_5 = arith.constant dense<0.000000e+00> : vector<8x16xf32>
    %40 = vector.multi_reduction <add>, %39, %cst_5 [2] : vector<8x16x16xf32> to vector<8x16xf32>
    %41 = vector.shape_cast %40 : vector<8x16xf32> to vector<8x16x1xf32>
    %42 = tpu.reciprocal %41 {approx = true} : vector<8x16x1xf32> -> vector<8x16x1xf32>
    %43 = vector.broadcast %42 : vector<8x16x1xf32> to vector<8x16x16xf32>
    %44 = arith.mulf %39, %43 : vector<8x16x16xf32>
    %45 = arith.truncf %44 : vector<8x16x16xf32> to vector<8x16x16xbf16>
    "tpu.trace_start"() <{level = 10 : i32, message = "bnm,bmd->bnd"}> : () -> ()
    %cst_6 = arith.constant dense<0.000000e+00> : vector<8x16x8xf32>
    %46 = tpu.matmul %45, %33, %cst_6 {dimension_numbers = #tpu.dot_dimension_numbers<[2], [1], [1], [2], [0, 0, 0, 1, 1, 2], [0], [0]>} : vector<8x16x16xbf16>, vector<8x16x8xbf16>, vector<8x16x8xf32> -> vector<8x16x8xf32>
    "tpu.trace_stop"() : () -> ()
    %47 = arith.truncf %46 : vector<8x16x8xf32> to vector<8x16x8xbf16>
    %48 = vector.shape_cast %47 : vector<8x16x8xbf16> to vector<4x32x8xbf16>
    %49 = vector.extract_strided_slice %48 {offsets = [0, 0, 0], sizes = [1, 32, 8], strides = [1, 1, 1]} : vector<4x32x8xbf16> to vector<1x32x8xbf16>
    %50 = vector.shape_cast %49 : vector<1x32x8xbf16> to vector<32x8xbf16>
    %51 = vector.extract_strided_slice %48 {offsets = [1, 0, 0], sizes = [1, 32, 8], strides = [1, 1, 1]} : vector<4x32x8xbf16> to vector<1x32x8xbf16>
    %52 = vector.shape_cast %51 : vector<1x32x8xbf16> to vector<32x8xbf16>
    %53 = vector.extract_strided_slice %48 {offsets = [2, 0, 0], sizes = [1, 32, 8], strides = [1, 1, 1]} : vector<4x32x8xbf16> to vector<1x32x8xbf16>
    %54 = vector.shape_cast %53 : vector<1x32x8xbf16> to vector<32x8xbf16>
    %55 = vector.extract_strided_slice %48 {offsets = [3, 0, 0], sizes = [1, 32, 8], strides = [1, 1, 1]} : vector<4x32x8xbf16> to vector<1x32x8xbf16>
    %56 = vector.shape_cast %55 : vector<1x32x8xbf16> to vector<32x8xbf16>
    %57 = tpu.concatenate %50, %52, %54, %56 in 1 : vector<32x8xbf16>, vector<32x8xbf16>, vector<32x8xbf16>, vector<32x8xbf16> -> vector<32x32xbf16>
    %c0_7 = arith.constant 0 : index
    %c0_8 = arith.constant 0 : index
    %58 = vector.load %arg3[%c0_7, %c0_8] : memref<32x32xbf16, #tpu.memory_space<vmem>>, vector<32x32xbf16>
    %cst_9 = arith.constant dense<0.000000e+00> : vector<32x32xf32>
    %59 = tpu.matmul %57, %58, %cst_9 {dimension_numbers = #tpu.dot_dimension_numbers<[1], [0], [0], [1], [0, 0, 1, 1], [], []>} : vector<32x32xbf16>, vector<32x32xbf16>, vector<32x32xf32> -> vector<32x32xf32>
    %c0_10 = arith.constant 0 : index
    %c0_11 = arith.constant 0 : index
    %60 = vector.load %arg4[%c0_10, %c0_11] : memref<1x32xf32, #tpu.memory_space<vmem>>, vector<1x32xf32>
    %61 = vector.broadcast %60 : vector<1x32xf32> to vector<32x32xf32>
    %62 = arith.addf %59, %61 : vector<32x32xf32>
    %c0_12 = arith.constant 0 : index
    %c0_13 = arith.constant 0 : index
    %63 = vector.load %arg5[%c0_12, %c0_13] : memref<32x32xf32, #tpu.memory_space<vmem>>, vector<32x32xf32>
    tpu.vector_store %arg5[%c0_12, %c0_13], %62 {strides = array<i32>} : memref<32x32xf32, #tpu.memory_space<vmem>>, vector<32x32xf32>,
    return
  }
  func.func @transform_0(%arg0: i32) -> (i32, i32) {
    %c0_i32 = arith.constant 0 : i32
    %c0_i32_0 = arith.constant 0 : i32
    return %arg0, %c0_i32 : i32, i32
  }
  func.func @transform_1(%arg0: i32) -> (i32, i32) {
    %c0_i32 = arith.constant 0 : i32
    %c0_i32_0 = arith.constant 0 : i32
    %c0_i32_1 = arith.constant 0 : i32
    return %c0_i32, %c0_i32_0 : i32, i32
  }
  func.func @transform_2(%arg0: i32) -> (i32, i32) {
    %c0_i32 = arith.constant 0 : i32
    %c0_i32_0 = arith.constant 0 : i32
    %c0_i32_1 = arith.constant 0 : i32
    return %c0_i32, %c0_i32_0 : i32, i32
  }
  func.func @transform_3(%arg0: i32) -> (i32, i32) {
    %c0_i32 = arith.constant 0 : i32
    %c0_i32_0 = arith.constant 0 : i32
    %c0_i32_1 = arith.constant 0 : i32
    return %c0_i32, %c0_i32_0 : i32, i32
  }
  func.func @transform_4(%arg0: i32) -> (i32, i32) {
    %c0_i32 = arith.constant 0 : i32
    %c0_i32_0 = arith.constant 0 : i32
    return %arg0, %c0_i32 : i32, i32
  }
}

</mosaic_0001>

<llo_original>
// kernel: tpu_custom_call.1
$region0: #{tpu_custom_call.1}
  #allocation0 [shape = 'u32[]', space=smem, size = 0x4, offset = 0x4, fixed_abs, tag = 'smem constant byte address 0x4 - core index']
  #allocation1 [shape = 'u32[144,128]{1,0:T(1,128)}', space=vmem, size = 0x12000, scoped, tag = 'internal scratch']
  %s0 = inlined_call_operand.hbm [shape: bf16[128,32], index: 0, kind: input, shape index: {}]
  %s1 = inlined_call_operand.hbm [shape: bf16[32,96], index: 1, kind: input, shape index: {}]
  %s2 = inlined_call_operand.hbm [shape: bf16[32,32], index: 2, kind: input, shape index: {}]
  %s3 = inlined_call_operand.hbm [shape: f32[1,32], index: 3, kind: input, shape index: {}]
  %s4 = inlined_call_operand.hbm [shape: f32[128,32], index: 4, kind: output, shape index: {}]
  %s5 = sld [smem:[#allocation0]]
  $region65: #{tpu_custom_call.1} parent=0
    _
  %s7 = ssub.s32 1, %s5
  %s8 = scalar_select 0, %s7, %s5
  $region1: #{tpu_custom_call.1} parent=0
    #allocation2 [shape = 'u8[16384]{0}', space=vmem, size = 0x4000, scoped, tag = 'input window, operand 0']
    #allocation3 [shape = 's32[2]{0}', space=sflag, size = 0x8, scoped, tag = 'scoped memory for tpu_custom_call.1']
    #allocation4 [shape = 's32[2]{0}', space=sflag, size = 0x8, scoped, tag = 'scoped memory for tpu_custom_call.1']
    #allocation5 [shape = 'u8[8192]{0}', space=vmem, size = 0x2000, scoped, tag = 'input window, operand 1, single buffered']
    #allocation6 [shape = 's32[1]{0}', space=sflag, size = 0x4, scoped, tag = 'scoped memory for tpu_custom_call.1']
    #allocation7 [shape = 'u8[8192]{0}', space=vmem, size = 0x2000, scoped, tag = 'input window, operand 2, single buffered']
    #allocation8 [shape = 'u8[512]{0}', space=vmem, size = 0x400, scoped, tag = 'input window, operand 3, single buffered']
    #allocation9 [shape = 's32[1]{0}', space=sflag, size = 0x4, scoped, tag = 'scoped memory for tpu_custom_call.1']
    #allocation10 [shape = 'u8[32768]{0}', space=vmem, size = 0x8000, scoped, tag = 'output window, operand 0']
    %9 = vsyncpa [#allocation3], 0
    %s10 = scalar_lea.sflag [#allocation3], 1
    %11 = vsyncpa %s10, 0
    %12 = vsyncpa [#allocation6], 0
    %13 = vsyncpa [#allocation9], 0
    %14 = vsyncpa [#allocation4], 0
    %s15 = scalar_lea.sflag [#allocation4], 1
    %16 = vsyncpa %s15, 0
    loop: start=0, step=1, limit=6
    $region2: #{tpu_custom_call.1} parent=1 // loop_pre_header
      _
    $region3: #{tpu_custom_call.1} parent=1 // loop_header
      %s18 = sphi 0, %s22
      %p19 = scmp.ge.s32.totalorder %s18, 6
      %s28 = sphi 0, %s30
      %s31 = sphi 0, %s28
      %s32 = sphi 0, %s31
      %s48 = sphi 0, %s32
      %s52 = sphi 0, %s52
      %s54 = sphi 0, %s52
      %s55 = sphi 0, %s54
      %s69 = sphi 0, %s55
      %s73 = sphi 0, %s73
      %s75 = sphi 0, %s73
      %s76 = sphi 0, %s75
      %s90 = sphi 0, %s76
      %s94 = sphi 0, %s94
      %s96 = sphi 0, %s94
      %s97 = sphi 0, %s96
      %s111 = sphi 0, %s97
      %s117 = sphi 0, %s119
      %s120 = sphi 0, %s117
      %s121 = sphi 0, %s120
      %s137 = sphi 0, %s121
    $region4: #{tpu_custom_call.1} parent=1 // loop_header_branch
      %21 = sbr.rel (%p19) target = $region8
    $region5: #{tpu_custom_call.1} parent=1 // loop_body
      %s23 = ssub.s32 %s18, 1
      %s24 = ssub.s32 %s18, 2
      %s25 = sadd.s32 %s18, 1
      %s26 = ssub.s32 %s18, %s25
      %p27 = scmp.eq.s32.totalorder %s26, 0
      %s29 = sadd.s32 %s28, 1
      %s30 = scalar_select %p27, %s28, %s29
      %p33 = pneg %p27
      %p34 = scmp.eq.s32.totalorder %s18, 3
      %p35 = por %p33, %p34
      %p36 = scmp.ne.s32.totalorder %s28, %s31
      %p37 = scmp.eq.s32.totalorder %s18, 0
      %p38 = por %p36, %p37
      %p39 = scmp.ne.s32.totalorder %s28, %s31
      %p40 = scmp.eq.s32.totalorder %s23, 3
      %p41 = por %p39, %p40
      %p42 = scmp.ne.s32.totalorder %s31, %s32
      %p43 = scmp.eq.s32.totalorder %s23, 0
      %p44 = por %p42, %p43
      %p45 = scmp.ne.s32.totalorder %s31, %s32
      %p46 = scmp.eq.s32.totalorder %s24, 3
      %p47 = por %p45, %p46
      %p49 = scmp.ne.s32.totalorder %s32, %s48
      %p50 = scmp.eq.s32.totalorder %s24, 0
      %p51 = por %p49, %p50
      %s53 = sadd.s32 %s52, 1
      %p56 = scmp.eq.s32.totalorder %s18, 3
      %p57 = scmp.ne.s32.totalorder %s52, %s54
      %p58 = scmp.eq.s32.totalorder %s18, 0
      %p59 = por %p57, %p58
      %p60 = scmp.ne.s32.totalorder %s52, %s54
      %p61 = scmp.eq.s32.totalorder %s23, 3
      %p62 = por %p60, %p61
      %p63 = scmp.ne.s32.totalorder %s54, %s55
      %p64 = scmp.eq.s32.totalorder %s23, 0
      %p65 = por %p63, %p64
      %p66 = scmp.ne.s32.totalorder %s54, %s55
      %p67 = scmp.eq.s32.totalorder %s24, 3
      %p68 = por %p66, %p67
      %p70 = scmp.ne.s32.totalorder %s55, %s69
      %p71 = scmp.eq.s32.totalorder %s24, 0
      %p72 = por %p70, %p71
      %s74 = sadd.s32 %s73, 1
      %p77 = scmp.eq.s32.totalorder %s18, 3
      %p78 = scmp.ne.s32.totalorder %s73, %s75
      %p79 = scmp.eq.s32.totalorder %s18, 0
      %p80 = por %p78, %p79
      %p81 = scmp.ne.s32.totalorder %s73, %s75
      %p82 = scmp.eq.s32.totalorder %s23, 3
      %p83 = por %p81, %p82
      %p84 = scmp.ne.s32.totalorder %s75, %s76
      %p85 = scmp.eq.s32.totalorder %s23, 0
      %p86 = por %p84, %p85
      %p87 = scmp.ne.s32.totalorder %s75, %s76
      %p88 = scmp.eq.s32.totalorder %s24, 3
      %p89 = por %p87, %p88
      %p91 = scmp.ne.s32.totalorder %s76, %s90
      %p92 = scmp.eq.s32.totalorder %s24, 0
      %p93 = por %p91, %p92
      %s95 = sadd.s32 %s94, 1
      %p98 = scmp.eq.s32.totalorder %s18, 3
      %p99 = scmp.ne.s32.totalorder %s94, %s96
      %p100 = scmp.eq.s32.totalorder %s18, 0
      %p101 = por %p99, %p100
      %p102 = scmp.ne.s32.totalorder %s94, %s96
      %p103 = scmp.eq.s32.totalorder %s23, 3
      %p104 = por %p102, %p103
      %p105 = scmp.ne.s32.totalorder %s96, %s97
      %p106 = scmp.eq.s32.totalorder %s23, 0
      %p107 = por %p105, %p106
      %p108 = scmp.ne.s32.totalorder %s96, %s97
      %p109 = scmp.eq.s32.totalorder %s24, 3
      %p110 = por %p108, %p109
      %p112 = scmp.ne.s32.totalorder %s97, %s111
      %p113 = scmp.eq.s32.totalorder %s24, 0
      %p114 = por %p112, %p113
      %s115 = ssub.s32 %s18, %s25
      %p116 = scmp.eq.s32.totalorder %s115, 0
      %s118 = sadd.s32 %s117, 1
      %s119 = scalar_select %p116, %s117, %s118
      %p122 = pneg %p116
      %p123 = scmp.eq.s32.totalorder %s18, 3
      %p124 = por %p122, %p123
      %p125 = scmp.ne.s32.totalorder %s117, %s120
      %p126 = scmp.eq.s32.totalorder %s18, 0
      %p127 = por %p125, %p126
      %p128 = scmp.ne.s32.totalorder %s117, %s120
      %p129 = scmp.eq.s32.totalorder %s23, 3
      %p130 = por %p128, %p129
      %p131 = scmp.ne.s32.totalorder %s120, %s121
      %p132 = scmp.eq.s32.totalorder %s23, 0
      %p133 = por %p131, %p132
      %p134 = scmp.ne.s32.totalorder %s120, %s121
      %p135 = scmp.eq.s32.totalorder %s24, 3
      %p136 = por %p134, %p135
      %p138 = scmp.ne.s32.totalorder %s121, %s137
      %p139 = scmp.eq.s32.totalorder %s24, 0
      %p140 = por %p138, %p139
      %p141 = scmp.le.s32.totalorder 1, %s18
      %p142 = scmp.lt.s32.totalorder %s18, 5
      %p143 = pnand %p141, %p142
      %p144 = pneg %p143
      // Predicated region
      $region9: #{tpu_custom_call.1} parent=5 // pred_check
        _
      $region10: #{tpu_custom_call.1} parent=5 // pred_check_branch
        %146 = sbr.rel (%p143) target = $region12
      $region11: #{tpu_custom_call.1} parent=5 // pred_region
        %s147 = ssub.s32 %s18, 1
        // Predicated region
        $region13: #{tpu_custom_call.1} parent=11 // pred_check
          %p148 = pneg %p65
        $region14: #{tpu_custom_call.1} parent=11 // pred_check_branch
          %150 = sbr.rel (%p148) target = $region16
        $region15: #{tpu_custom_call.1} parent=11 // pred_region
          %s152 = ssub.s32 256, 256
          %153 = vsyncadd [#allocation6], %s152
          %s154 = sshll.u32 [#allocation5], 4
          %s155 = int_to_ptr.vmem [resolvable:$true] %s154
          %160 = dma.hbm_to_vmem [thread:$0]  %s1, 256, %s155, [#allocation6], 64, 64, 4
        $region16: #{tpu_custom_call.1} parent=11 // pred_fallthru
          _
        // Predicated region
        $region17: #{tpu_custom_call.1} parent=11 // pred_check
          %p161 = pneg %p86
        $region18: #{tpu_custom_call.1} parent=11 // pred_check_branch
          %163 = sbr.rel (%p161) target = $region20
        $region19: #{tpu_custom_call.1} parent=11 // pred_region
          %s165 = ssub.s32 256, 256
          %166 = vsyncadd [#allocation6], %s165
          %s167 = sshll.u32 [#allocation7], 4
          %s168 = int_to_ptr.vmem [resolvable:$true] %s167
          %173 = dma.hbm_to_vmem [thread:$0]  %s2, 256, %s168, [#allocation6], 64, 64, 4
        $region20: #{tpu_custom_call.1} parent=11 // pred_fallthru
          _
        // Predicated region
        $region21: #{tpu_custom_call.1} parent=11 // pred_check
          %p174 = pneg %p107
        $region22: #{tpu_custom_call.1} parent=11 // pred_check_branch
          %176 = sbr.rel (%p174) target = $region24
        $region23: #{tpu_custom_call.1} parent=11 // pred_region
          %s178 = ssub.s32 16, 16
          %179 = vsyncadd [#allocation9], %s178
          %s181 = sshll.u32 [#allocation8], 4
          %s182 = int_to_ptr.vmem [resolvable:$true] %s181
          %184 = dma.hbm_to_vmem [thread:$0]  %s3, 16, %s182, [#allocation9]
        $region24: #{tpu_custom_call.1} parent=11 // pred_fallthru
          _
      $region12: #{tpu_custom_call.1} parent=5 // pred_fallthru
        _
      %p185 = scmp.lt.s32.totalorder %s18, 4
      // Predicated region
      $region25: #{tpu_custom_call.1} parent=5 // pred_check
        %p186 = pneg %p185
      $region26: #{tpu_custom_call.1} parent=5 // pred_check_branch
        %188 = sbr.rel (%p186) target = $region28
      $region27: #{tpu_custom_call.1} parent=5 // pred_region
        // Predicated region
        $region29: #{tpu_custom_call.1} parent=27 // pred_check
          %p189 = pneg %p38
        $region30: #{tpu_custom_call.1} parent=27 // pred_check_branch
          %191 = sbr.rel (%p189) target = $region32
        $region31: #{tpu_custom_call.1} parent=27 // pred_region
          %s192 = sand.u32 %s28, 1
          %s193 = scalar_lea.sflag [#allocation3], %s192
          %s194 = sand.u32 %s28, 1
          %s195 = smul.addr %s194, 16
          %s196 = scalar_lea.vmem [#allocation2], %s195
          %s197 = smul.u32 4, %s18
          %s199 = ssub.s32 256, 256
          %200 = vsyncadd %s193, %s199
          %s201 = smul.addr %s197, 64
          %s202 = scalar_lea.hbm %s0, %s201
          %s203 = sshll.u32 %s196, 4
          %s204 = int_to_ptr.vmem [resolvable:$true] %s203
          %209 = dma.hbm_to_vmem [thread:$0]  %s202, 256, %s204, %s193, 64, 64, 4
        $region32: #{tpu_custom_call.1} parent=27 // pred_fallthru
          _
      $region28: #{tpu_custom_call.1} parent=5 // pred_fallthru
        _
      %p210 = scmp.le.s32.totalorder 1, %s18
      %p211 = scmp.lt.s32.totalorder %s18, 5
      %p212 = pnand %p210, %p211
      %p213 = pneg %p212
      // Predicated region
      $region33: #{tpu_custom_call.1} parent=5 // pred_check
        _
      $region34: #{tpu_custom_call.1} parent=5 // pred_check_branch
        %215 = sbr.rel (%p212) target = $region36
      $region35: #{tpu_custom_call.1} parent=5 // pred_region
        %s216 = ssub.s32 %s18, 1
        %s217 = sand.u32 %s31, 1
        %s218 = scalar_lea.sflag [#allocation3], %s217
        %s219 = sand.u32 %s31, 1
        %s220 = smul.addr %s219, 16
        %s221 = scalar_lea.vmem [#allocation2], %s220
        // Predicated region
        $region37: #{tpu_custom_call.1} parent=35 // pred_check
          %p222 = pneg %p44
        $region38: #{tpu_custom_call.1} parent=35 // pred_check_branch
          %224 = sbr.rel (%p222) target = $region40
        $region39: #{tpu_custom_call.1} parent=35 // pred_region
          %225 = dma.done %s218, 256
        $region40: #{tpu_custom_call.1} parent=35 // pred_fallthru
          _
        // Predicated region
        $region41: #{tpu_custom_call.1} parent=35 // pred_check
          %p226 = pneg %p65
        $region42: #{tpu_custom_call.1} parent=35 // pred_check_branch
          %228 = sbr.rel (%p226) target = $region44
        $region43: #{tpu_custom_call.1} parent=35 // pred_region
          %229 = dma.done [#allocation6], 256
        $region44: #{tpu_custom_call.1} parent=35 // pred_fallthru
          _
        // Predicated region
        $region45: #{tpu_custom_call.1} parent=35 // pred_check
          %p230 = pneg %p86
        $region46: #{tpu_custom_call.1} parent=35 // pred_check_branch
          %232 = sbr.rel (%p230) target = $region48
        $region47: #{tpu_custom_call.1} parent=35 // pred_region
          %233 = dma.done [#allocation6], 256
        $region48: #{tpu_custom_call.1} parent=35 // pred_fallthru
          _
        // Predicated region
        $region49: #{tpu_custom_call.1} parent=35 // pred_check
          %p234 = pneg %p107
        $region50: #{tpu_custom_call.1} parent=35 // pred_check_branch
          %236 = sbr.rel (%p234) target = $region52
        $region51: #{tpu_custom_call.1} parent=35 // pred_region
          %237 = dma.done [#allocation9], 16
        $region52: #{tpu_custom_call.1} parent=35 // pred_fallthru
          _
        %s238 = sand.u32 %s31, 1
        %s239 = scalar_lea.sflag [#allocation3], %s238
        %s240 = sand.u32 %s31, 1
        %s241 = smul.addr %s240, 16
        %s242 = scalar_lea.vmem [#allocation2], %s241
        %p243 = pneg %p44
        %p244 = pneg %p41
        %p245 = pneg %p65
        %p246 = pneg %p62
        %p247 = pneg %p86
        %p248 = pneg %p83
        %p249 = pneg %p107
        %p250 = pneg %p104
        %p251 = pneg %p133
        %p252 = pneg %p130
        %s253 = sand.u32 %s120, 1
        %s254 = scalar_lea.sflag [#allocation4], %s253
        %s255 = sand.u32 %s120, 1
        %s256 = smul.addr %s255, 32
        %s257 = scalar_lea.vmem [#allocation10], %s256
        %s258 = smul.u32 4, %s23
        %s259 = smul.u32 4, %s23
        %v261 = vld [vmem:[%s221] sm:$0xf]
        %v262 = vld [vmem:[%s221 + $0x4] sm:$0xf]
        %v263 = vld [vmem:[%s221 + $0x8] sm:$0xf]
        %v264 = vld [vmem:[%s221 + $0xc] sm:$0xf]
        %v265 = vld [vmem:[#allocation5] sm:$0xf]
        %v266 = vld [vmem:[#allocation5 + $0x4] sm:$0xf]
        %v267 = vld [vmem:[#allocation5 + $0x8] sm:$0xf]
        %v268 = vld [vmem:[#allocation5 + $0xc] sm:$0xf]
        %v273 = vunpack.c.l.b16 %v261
        %v274 = vunpack.c.l.b16 %v262
        %v275 = vunpack.c.l.b16 %v263
        %v276 = vunpack.c.l.b16 %v264
        %v277 = vpack.c.b16 %v274, %v273
        %v278 = vpack.c.b16 %v276, %v275
        %v283 = vunpack.c.l.b16 %v265
        %v284 = vunpack.c.l.b16 %v266
        %v285 = vunpack.c.l.b16 %v267
        %v286 = vunpack.c.l.b16 %v268
        %v287 = vpack.c.b16 %v284, %v283
        %v288 = vpack.c.b16 %v286, %v285
        %vm291 = vcmask 261120
        %v293 = vsel %vm291, %v277, 0
        %v296 = vsel %vm291, %v278, 0
        %298 = vmatprep.subr.bf16.mxu0 0
        %299 = vmatpush1.bf16.msra.mxu0 %v287
        %300 = vmatprep.subr.bf16.mxu0 0
        %301 = vmatpush1.bf16.msra.mxu0 %v288
        %302 = vmatprep.subr.bf16.mxu0 0
        %303 = vmatpush1.bf16.msra.mxu0 0
        %304 = vmatprep.subr.bf16.mxu0 0
        %305 = vmatpush1.bf16.msra.mxu0 0
        %306 = vmatprep.subr.bf16.mxu0 0
        %307 = vmatpush1.bf16.msra.mxu0 0
        %308 = vmatprep.subr.bf16.mxu0 0
        %309 = vmatpush1.bf16.msra.mxu0 0
        %310 = vmatprep.subr.bf16.mxu0 0
        %311 = vmatpush1.bf16.msra.mxu0 0
        %312 = vmatprep.subr.bf16.mxu0 0
        %313 = vmatpush1.bf16.msra.mxu0 0
        %314 = vmatprep.subr.bf16.mxu0 0
        %315 = vmatpush1.bf16.msra.mxu0 0
        %316 = vmatprep.subr.bf16.mxu0 0
        %317 = vmatpush1.bf16.msra.mxu0 0
        %318 = vmatprep.subr.bf16.mxu0 0
        %319 = vmatpush1.bf16.msra.mxu0 0
        %320 = vmatprep.subr.bf16.mxu0 0
        %321 = vmatpush1.bf16.msra.mxu0 0
        %322 = vmatprep.subr.bf16.mxu0 0
        %323 = vmatpush1.bf16.msra.mxu0 0
        %324 = vmatprep.subr.bf16.mxu0 0
        %325 = vmatpush1.bf16.msra.mxu0 0
        %326 = vmatprep.subr.bf16.mxu0 0
        %327 = vmatpush1.bf16.msra.mxu0 0
        %328 = vmatprep.subr.bf16.mxu0 0
        %329 = vmatpush1.bf16.msra.mxu0 0
        %330 = vmatprep.mubr.bf16.mxu0 0
        %331 = vmatmul.mubr.bf16.gmra.mrb[0].mxu0 %v293
        %v332 = vpop.f32.mrb[0].mxu0
        %v333 = vadd.f32 0.0, %v332
        %v334 = vpop.f32.mrb[0].mxu0
        %v335 = vpop.f32.mrb[0].mxu0
        %v336 = vadd.f32 0.0, %v335
        %v337 = vpop.f32.mrb[0].mxu0
        %338 = vmatprep.mubr.bf16.mxu0 0
        %339 = vmatmul.mubr.bf16.gmra.mrb[0].mxu0 %v296
        %v340 = vpop.f32.mrb[0].mxu0
        %v341 = vadd.f32 0.0, %v340
        %v342 = vpop.f32.mrb[0].mxu0
        %v343 = vpop.f32.mrb[0].mxu0
        %v344 = vadd.f32 0.0, %v343
        %v345 = vpop.f32.mrb[0].mxu0
        %346 = vdwg.mxu0
        %v347 = vpack.c.bf16 %v336, %v333
        %v348 = vpack.c.bf16 %v344, %v341
        %351 = vrot.lane.b32.xlu0 %v347, 120
        %v352 = vpop.permute.xlu0 %351
        %353 = vrot.lane.b32.xlu0 %v348, 120
        %v354 = vpop.permute.xlu0 %353
        %355 = vrot.lane.b32.xlu0 %v347, 112
        %v356 = vpop.permute.xlu0 %355
        %357 = vrot.lane.b32.xlu0 %v348, 112
        %v358 = vpop.permute.xlu0 %357
        %359 = vrot.lane.b32.xlu0 %v347, 104
        %v360 = vpop.permute.xlu0 %359
        %361 = vrot.lane.b32.xlu0 %v348, 104
        %v362 = vpop.permute.xlu0 %361
        %363 = vrot.lane.b32.xlu0 %v347, 96
        %v364 = vpop.permute.xlu0 %363
        %vm365 = vcmask 64512
        %v367 = vsel %vm365, %v347, 0
        %v370 = vsel %vm365, %v364, 0
        %372 = vmatprep.subr.bf16.mxu0 0
        %373 = vmatpush1.bf16.xpose.msra.mxu0 %v370
        %374 = vmatprep.subr.bf16.mxu0 0
        %375 = vmatpush1.bf16.xpose.msra.mxu0 0
        %376 = vmatprep.subr.bf16.mxu0 0
        %377 = vmatpush1.bf16.xpose.msra.mxu0 0
        %378 = vmatprep.subr.bf16.mxu0 0
        %379 = vmatpush1.bf16.xpose.msra.mxu0 0
        %380 = vmatprep.subr.bf16.mxu0 0
        %381 = vmatpush1.bf16.xpose.msra.mxu0 0
        %382 = vmatprep.subr.bf16.mxu0 0
        %383 = vmatpush1.bf16.xpose.msra.mxu0 0
        %384 = vmatprep.subr.bf16.mxu0 0
        %385 = vmatpush1.bf16.xpose.msra.mxu0 0
        %386 = vmatprep.subr.bf16.mxu0 0
        %387 = vmatpush1.bf16.xpose.msra.mxu0 0
        %388 = vmatprep.subr.bf16.mxu0 0
        %389 = vmatpush1.bf16.xpose.msra.mxu0 0
        %390 = vmatprep.subr.bf16.mxu0 0
        %391 = vmatpush1.bf16.xpose.msra.mxu0 0
        %392 = vmatprep.subr.bf16.mxu0 0
        %393 = vmatpush1.bf16.xpose.msra.mxu0 0
        %394 = vmatprep.subr.bf16.mxu0 0
        %395 = vmatpush1.bf16.xpose.msra.mxu0 0
        %396 = vmatprep.subr.bf16.mxu0 0
        %397 = vmatpush1.bf16.xpose.msra.mxu0 0
        %398 = vmatprep.subr.bf16.mxu0 0
        %399 = vmatpush1.bf16.xpose.msra.mxu0 0
        %400 = vmatprep.subr.bf16.mxu0 0
        %401 = vmatpush1.bf16.xpose.msra.mxu0 0
        %402 = vmatprep.subr.bf16.mxu0 0
        %403 = vmatpush1.bf16.xpose.msra.mxu0 0
        %404 = vmatprep.mubr.bf16.mxu0 0
        %405 = vmatmul.mubr.bf16.gmra.mrb[0].mxu0 %v367
        %v406 = vpop.f32.mrb[0].mxu0
        %v407 = vadd.f32 0.0, %v406
        %v408 = vpop.f32.mrb[0].mxu0
        %v409 = vpop.f32.mrb[0].mxu0
        %v410 = vadd.f32 0.0, %v409
        %v411 = vpop.f32.mrb[0].mxu0
        %412 = vdwg.mxu0
        %413 = vrot.lane.b32.xlu0 %v348, 96
        %v414 = vpop.permute.xlu0 %413
        %v416 = vsel %vm365, %v348, 0
        %v419 = vsel %vm365, %v414, 0
        %421 = vmatprep.subr.bf16.mxu0 0
        %422 = vmatpush1.bf16.xpose.msra.mxu0 %v419
        %423 = vmatprep.subr.bf16.mxu0 0
        %424 = vmatpush1.bf16.xpose.msra.mxu0 0
        %425 = vmatprep.subr.bf16.mxu0 0
        %426 = vmatpush1.bf16.xpose.msra.mxu0 0
        %427 = vmatprep.subr.bf16.mxu0 0
        %428 = vmatpush1.bf16.xpose.msra.mxu0 0
        %429 = vmatprep.subr.bf16.mxu0 0
        %430 = vmatpush1.bf16.xpose.msra.mxu0 0
        %431 = vmatprep.subr.bf16.mxu0 0
        %432 = vmatpush1.bf16.xpose.msra.mxu0 0
        %433 = vmatprep.subr.bf16.mxu0 0
        %434 = vmatpush1.bf16.xpose.msra.mxu0 0
        %435 = vmatprep.subr.bf16.mxu0 0
        %436 = vmatpush1.bf16.xpose.msra.mxu0 0
        %437 = vmatprep.subr.bf16.mxu0 0
        %438 = vmatpush1.bf16.xpose.msra.mxu0 0
        %439 = vmatprep.subr.bf16.mxu0 0
        %440 = vmatpush1.bf16.xpose.msra.mxu0 0
        %441 = vmatprep.subr.bf16.mxu0 0
        %442 = vmatpush1.bf16.xpose.msra.mxu0 0
        %443 = vmatprep.subr.bf16.mxu0 0
        %444 = vmatpush1.bf16.xpose.msra.mxu0 0
        %445 = vmatprep.subr.bf16.mxu0 0
        %446 = vmatpush1.bf16.xpose.msra.mxu0 0
        %447 = vmatprep.subr.bf16.mxu0 0
        %448 = vmatpush1.bf16.xpose.msra.mxu0 0
        %449 = vmatprep.subr.bf16.mxu0 0
        %450 = vmatpush1.bf16.xpose.msra.mxu0 0
        %451 = vmatprep.subr.bf16.mxu0 0
        %452 = vmatpush1.bf16.xpose.msra.mxu0 0
        %453 = vmatprep.mubr.bf16.mxu0 0
        %454 = vmatmul.mubr.bf16.gmra.mrb[0].mxu0 %v416
        %v455 = vpop.f32.mrb[0].mxu0
        %v456 = vadd.f32 0.0, %v455
        %v457 = vpop.f32.mrb[0].mxu0
        %v458 = vpop.f32.mrb[0].mxu0
        %v459 = vadd.f32 0.0, %v458
        %v460 = vpop.f32.mrb[0].mxu0
        %461 = vdwg.mxu0
        %462 = vrot.lane.b32.xlu0 %v352, 96
        %v463 = vpop.permute.xlu0 %462
        %v465 = vsel %vm365, %v352, 0
        %v468 = vsel %vm365, %v463, 0
        %470 = vmatprep.subr.bf16.mxu0 0
        %471 = vmatpush1.bf16.xpose.msra.mxu0 %v468
        %472 = vmatprep.subr.bf16.mxu0 0
        %473 = vmatpush1.bf16.xpose.msra.mxu0 0
        %474 = vmatprep.subr.bf16.mxu0 0
        %475 = vmatpush1.bf16.xpose.msra.mxu0 0
        %476 = vmatprep.subr.bf16.mxu0 0
        %477 = vmatpush1.bf16.xpose.msra.mxu0 0
        %478 = vmatprep.subr.bf16.mxu0 0
        %479 = vmatpush1.bf16.xpose.msra.mxu0 0
        %480 = vmatprep.subr.bf16.mxu0 0
        %481 = vmatpush1.bf16.xpose.msra.mxu0 0
        %482 = vmatprep.subr.bf16.mxu0 0
        %483 = vmatpush1.bf16.xpose.msra.mxu0 0
        %484 = vmatprep.subr.bf16.mxu0 0
        %485 = vmatpush1.bf16.xpose.msra.mxu0 0
        %486 = vmatprep.subr.bf16.mxu0 0
        %487 = vmatpush1.bf16.xpose.msra.mxu0 0
        %488 = vmatprep.subr.bf16.mxu0 0
        %489 = vmatpush1.bf16.xpose.msra.mxu0 0
        %490 = vmatprep.subr.bf16.mxu0 0
        %491 = vmatpush1.bf16.xpose.msra.mxu0 0
        %492 = vmatprep.subr.bf16.mxu0 0
        %493 = vmatpush1.bf16.xpose.msra.mxu0 0
        %494 = vmatprep.subr.bf16.mxu0 0
        %495 = vmatpush1.bf16.xpose.msra.mxu0 0
        %496 = vmatprep.subr.bf16.mxu0 0
        %497 = vmatpush1.bf16.xpose.msra.mxu0 0
        %498 = vmatprep.subr.bf16.mxu0 0
        %499 = vmatpush1.bf16.xpose.msra.mxu0 0
        %500 = vmatprep.subr.bf16.mxu0 0
        %501 = vmatpush1.bf16.xpose.msra.mxu0 0
        %502 = vmatprep.mubr.bf16.mxu0 0
        %503 = vmatmul.mubr.bf16.gmra.mrb[0].mxu0 %v465
        %v504 = vpop.f32.mrb[0].mxu0
        %v505 = vadd.f32 0.0, %v504
        %v506 = vpop.f32.mrb[0].mxu0
        %v507 = vpop.f32.mrb[0].mxu0
        %v508 = vadd.f32 0.0, %v507
        %v509 = vpop.f32.mrb[0].mxu0
        %510 = vdwg.mxu0
        %511 = vrot.lane.b32.xlu0 %v354, 96
        %v512 = vpop.permute.xlu0 %511
        %v514 = vsel %vm365, %v354, 0
        %v517 = vsel %vm365, %v512, 0
        %519 = vmatprep.subr.bf16.mxu0 0
        %520 = vmatpush1.bf16.xpose.msra.mxu0 %v517
        %521 = vmatprep.subr.bf16.mxu0 0
        %522 = vmatpush1.bf16.xpose.msra.mxu0 0
        %523 = vmatprep.subr.bf16.mxu0 0
        %524 = vmatpush1.bf16.xpose.msra.mxu0 0
        %525 = vmatprep.subr.bf16.mxu0 0
        %526 = vmatpush1.bf16.xpose.msra.mxu0 0
        %527 = vmatprep.subr.bf16.mxu0 0
        %528 = vmatpush1.bf16.xpose.msra.mxu0 0
        %529 = vmatprep.subr.bf16.mxu0 0
        %530 = vmatpush1.bf16.xpose.msra.mxu0 0
        %531 = vmatprep.subr.bf16.mxu0 0
        %532 = vmatpush1.bf16.xpose.msra.mxu0 0
        %533 = vmatprep.subr.bf16.mxu0 0
        %534 = vmatpush1.bf16.xpose.msra.mxu0 0
        %535 = vmatprep.subr.bf16.mxu0 0
        %536 = vmatpush1.bf16.xpose.msra.mxu0 0
        %537 = vmatprep.subr.bf16.mxu0 0
        %538 = vmatpush1.bf16.xpose.msra.mxu0 0
        %539 = vmatprep.subr.bf16.mxu0 0
        %540 = vmatpush1.bf16.xpose.msra.mxu0 0
        %541 = vmatprep.subr.bf16.mxu0 0
        %542 = vmatpush1.bf16.xpose.msra.mxu0 0
        %543 = vmatprep.subr.bf16.mxu0 0
        %544 = vmatpush1.bf16.xpose.msra.mxu0 0
        %545 = vmatprep.subr.bf16.mxu0 0
        %546 = vmatpush1.bf16.xpose.msra.mxu0 0
        %547 = vmatprep.subr.bf16.mxu0 0
        %548 = vmatpush1.bf16.xpose.msra.mxu0 0
        %549 = vmatprep.subr.bf16.mxu0 0
        %550 = vmatpush1.bf16.xpose.msra.mxu0 0
        %551 = vmatprep.mubr.bf16.mxu0 0
        %552 = vmatmul.mubr.bf16.gmra.mrb[0].mxu0 %v514
        %v553 = vpop.f32.mrb[0].mxu0
        %v554 = vadd.f32 0.0, %v553
        %v555 = vpop.f32.mrb[0].mxu0
        %v556 = vpop.f32.mrb[0].mxu0
        %v557 = vadd.f32 0.0, %v556
        %v558 = vpop.f32.mrb[0].mxu0
        %559 = vdwg.mxu0
        %560 = vrot.lane.b32.xlu0 %v356, 96
        %v561 = vpop.permute.xlu0 %560
        %v563 = vsel %vm365, %v356, 0
        %v566 = vsel %vm365, %v561, 0
        %568 = vmatprep.subr.bf16.mxu0 0
        %569 = vmatpush1.bf16.xpose.msra.mxu0 %v566
        %570 = vmatprep.subr.bf16.mxu0 0
        %571 = vmatpush1.bf16.xpose.msra.mxu0 0
        %572 = vmatprep.subr.bf16.mxu0 0
        %573 = vmatpush1.bf16.xpose.msra.mxu0 0
        %574 = vmatprep.subr.bf16.mxu0 0
        %575 = vmatpush1.bf16.xpose.msra.mxu0 0
        %576 = vmatprep.subr.bf16.mxu0 0
        %577 = vmatpush1.bf16.xpose.msra.mxu0 0
        %578 = vmatprep.subr.bf16.mxu0 0
        %579 = vmatpush1.bf16.xpose.msra.mxu0 0
        %580 = vmatprep.subr.bf16.mxu0 0
        %581 = vmatpush1.bf16.xpose.msra.mxu0 0
        %582 = vmatprep.subr.bf16.mxu0 0
        %583 = vmatpush1.bf16.xpose.msra.mxu0 0
        %584 = vmatprep.subr.bf16.mxu0 0
        %585 = vmatpush1.bf16.xpose.msra.mxu0 0
        %586 = vmatprep.subr.bf16.mxu0 0
        %587 = vmatpush1.bf16.xpose.msra.mxu0 0
        %588 = vmatprep.subr.bf16.mxu0 0
        %589 = vmatpush1.bf16.xpose.msra.mxu0 0
        %590 = vmatprep.subr.bf16.mxu0 0
        %591 = vmatpush1.bf16.xpose.msra.mxu0 0
        %592 = vmatprep.subr.bf16.mxu0 0
        %593 = vmatpush1.bf16.xpose.msra.mxu0 0
        %594 = vmatprep.subr.bf16.mxu0 0
        %595 = vmatpush1.bf16.xpose.msra.mxu0 0
        %596 = vmatprep.subr.bf16.mxu0 0
        %597 = vmatpush1.bf16.xpose.msra.mxu0 0
        %598 = vmatprep.subr.bf16.mxu0 0
        %599 = vmatpush1.bf16.xpose.msra.mxu0 0
        %600 = vmatprep.mubr.bf16.mxu0 0
        %601 = vmatmul.mubr.bf16.gmra.mrb[0].mxu0 %v563
        %v602 = vpop.f32.mrb[0].mxu0
        %v603 = vadd.f32 0.0, %v602
        %v604 = vpop.f32.mrb[0].mxu0
        %v605 = vpop.f32.mrb[0].mxu0
        %v606 = vadd.f32 0.0, %v605
        %v607 = vpop.f32.mrb[0].mxu0
        %608 = vdwg.mxu0
        %609 = vrot.lane.b32.xlu0 %v358, 96
        %v610 = vpop.permute.xlu0 %609
        %v612 = vsel %vm365, %v358, 0
        %v615 = vsel %vm365, %v610, 0
        %617 = vmatprep.subr.bf16.mxu0 0
        %618 = vmatpush1.bf16.xpose.msra.mxu0 %v615
        %619 = vmatprep.subr.bf16.mxu0 0
        %620 = vmatpush1.bf16.xpose.msra.mxu0 0
        %621 = vmatprep.subr.bf16.mxu0 0
        %622 = vmatpush1.bf16.xpose.msra.mxu0 0
        %623 = vmatprep.subr.bf16.mxu0 0
        %624 = vmatpush1.bf16.xpose.msra.mxu0 0
        %625 = vmatprep.subr.bf16.mxu0 0
        %626 = vmatpush1.bf16.xpose.msra.mxu0 0
        %627 = vmatprep.subr.bf16.mxu0 0
        %628 = vmatpush1.bf16.xpose.msra.mxu0 0
        %629 = vmatprep.subr.bf16.mxu0 0
        %630 = vmatpush1.bf16.xpose.msra.mxu0 0
        %631 = vmatprep.subr.bf16.mxu0 0
        %632 = vmatpush1.bf16.xpose.msra.mxu0 0
        %633 = vmatprep.subr.bf16.mxu0 0
        %634 = vmatpush1.bf16.xpose.msra.mxu0 0
        %635 = vmatprep.subr.bf16.mxu0 0
        %636 = vmatpush1.bf16.xpose.msra.mxu0 0
        %637 = vmatprep.subr.bf16.mxu0 0
        %638 = vmatpush1.bf16.xpose.msra.mxu0 0
        %639 = vmatprep.subr.bf16.mxu0 0
        %640 = vmatpush1.bf16.xpose.msra.mxu0 0
        %641 = vmatprep.subr.bf16.mxu0 0
        %642 = vmatpush1.bf16.xpose.msra.mxu0 0
        %643 = vmatprep.subr.bf16.mxu0 0
        %644 = vmatpush1.bf16.xpose.msra.mxu0 0
        %645 = vmatprep.subr.bf16.mxu0 0
        %646 = vmatpush1.bf16.xpose.msra.mxu0 0
        %647 = vmatprep.subr.bf16.mxu0 0
        %648 = vmatpush1.bf16.xpose.msra.mxu0 0
        %649 = vmatprep.mubr.bf16.mxu0 0
        %650 = vmatmul.mubr.bf16.gmra.mrb[0].mxu0 %v612
        %v651 = vpop.f32.mrb[0].mxu0
        %v652 = vadd.f32 0.0, %v651
        %v653 = vpop.f32.mrb[0].mxu0
        %v654 = vpop.f32.mrb[0].mxu0
        %v655 = vadd.f32 0.0, %v654
        %v656 = vpop.f32.mrb[0].mxu0
        %657 = vdwg.mxu0
        %658 = vrot.lane.b32.xlu0 %v360, 96
        %v659 = vpop.permute.xlu0 %658
        %v661 = vsel %vm365, %v360, 0
        %v664 = vsel %vm365, %v659, 0
        %666 = vmatprep.subr.bf16.mxu0 0
        %667 = vmatpush1.bf16.xpose.msra.mxu0 %v664
        %668 = vmatprep.subr.bf16.mxu0 0
        %669 = vmatpush1.bf16.xpose.msra.mxu0 0
        %670 = vmatprep.subr.bf16.mxu0 0
        %671 = vmatpush1.bf16.xpose.msra.mxu0 0
        %672 = vmatprep.subr.bf16.mxu0 0
        %673 = vmatpush1.bf16.xpose.msra.mxu0 0
        %674 = vmatprep.subr.bf16.mxu0 0
        %675 = vmatpush1.bf16.xpose.msra.mxu0 0
        %676 = vmatprep.subr.bf16.mxu0 0
        %677 = vmatpush1.bf16.xpose.msra.mxu0 0
        %678 = vmatprep.subr.bf16.mxu0 0
        %679 = vmatpush1.bf16.xpose.msra.mxu0 0
        %680 = vmatprep.subr.bf16.mxu0 0
        %681 = vmatpush1.bf16.xpose.msra.mxu0 0
        %682 = vmatprep.subr.bf16.mxu0 0
        %683 = vmatpush1.bf16.xpose.msra.mxu0 0
        %684 = vmatprep.subr.bf16.mxu0 0
        %685 = vmatpush1.bf16.xpose.msra.mxu0 0
        %686 = vmatprep.subr.bf16.mxu0 0
        %687 = vmatpush1.bf16.xpose.msra.mxu0 0
        %688 = vmatprep.subr.bf16.mxu0 0
        %689 = vmatpush1.bf16.xpose.msra.mxu0 0
        %690 = vmatprep.subr.bf16.mxu0 0
        %691 = vmatpush1.bf16.xpose.msra.mxu0 0
        %692 = vmatprep.subr.bf16.mxu0 0
        %693 = vmatpush1.bf16.xpose.msra.mxu0 0
        %694 = vmatprep.subr.bf16.mxu0 0
        %695 = vmatpush1.bf16.xpose.msra.mxu0 0
        %696 = vmatprep.subr.bf16.mxu0 0
        %697 = vmatpush1.bf16.xpose.msra.mxu0 0
        %698 = vmatprep.mubr.bf16.mxu0 0
        %699 = vmatmul.mubr.bf16.gmra.mrb[0].mxu0 %v661
        %v700 = vpop.f32.mrb[0].mxu0
        %v701 = vadd.f32 0.0, %v700
        %v702 = vpop.f32.mrb[0].mxu0
        %v703 = vpop.f32.mrb[0].mxu0
        %v704 = vadd.f32 0.0, %v703
        %v705 = vpop.f32.mrb[0].mxu0
        %706 = vdwg.mxu0
        %707 = vrot.lane.b32.xlu0 %v362, 96
        %v708 = vpop.permute.xlu0 %707
        %v710 = vsel %vm365, %v362, 0
        %v713 = vsel %vm365, %v708, 0
        %715 = vmatprep.subr.bf16.mxu0 0
        %716 = vmatpush1.bf16.xpose.msra.mxu0 %v713
        %717 = vmatprep.subr.bf16.mxu0 0
        %718 = vmatpush1.bf16.xpose.msra.mxu0 0
        %719 = vmatprep.subr.bf16.mxu0 0
        %720 = vmatpush1.bf16.xpose.msra.mxu0 0
        %721 = vmatprep.subr.bf16.mxu0 0
        %722 = vmatpush1.bf16.xpose.msra.mxu0 0
        %723 = vmatprep.subr.bf16.mxu0 0
        %724 = vmatpush1.bf16.xpose.msra.mxu0 0
        %725 = vmatprep.subr.bf16.mxu0 0
        %726 = vmatpush1.bf16.xpose.msra.mxu0 0
        %727 = vmatprep.subr.bf16.mxu0 0
        %728 = vmatpush1.bf16.xpose.msra.mxu0 0
        %729 = vmatprep.subr.bf16.mxu0 0
        %730 = vmatpush1.bf16.xpose.msra.mxu0 0
        %731 = vmatprep.subr.bf16.mxu0 0
        %732 = vmatpush1.bf16.xpose.msra.mxu0 0
        %733 = vmatprep.subr.bf16.mxu0 0
        %734 = vmatpush1.bf16.xpose.msra.mxu0 0
        %735 = vmatprep.subr.bf16.mxu0 0
        %736 = vmatpush1.bf16.xpose.msra.mxu0 0
        %737 = vmatprep.subr.bf16.mxu0 0
        %738 = vmatpush1.bf16.xpose.msra.mxu0 0
        %739 = vmatprep.subr.bf16.mxu0 0
        %740 = vmatpush1.bf16.xpose.msra.mxu0 0
        %741 = vmatprep.subr.bf16.mxu0 0
        %742 = vmatpush1.bf16.xpose.msra.mxu0 0
        %743 = vmatprep.subr.bf16.mxu0 0
        %744 = vmatpush1.bf16.xpose.msra.mxu0 0
        %745 = vmatprep.subr.bf16.mxu0 0
        %746 = vmatpush1.bf16.xpose.msra.mxu0 0
        %747 = vmatprep.mubr.bf16.mxu0 0
        %748 = vmatmul.mubr.bf16.gmra.mrb[0].mxu0 %v710
        %v749 = vpop.f32.mrb[0].mxu0
        %v750 = vadd.f32 0.0, %v749
        %v751 = vpop.f32.mrb[0].mxu0
        %v752 = vpop.f32.mrb[0].mxu0
        %v753 = vadd.f32 0.0, %v752
        %v754 = vpop.f32.mrb[0].mxu0
        %755 = vdwg.mxu0
        %vm756 = vcmask 130048
        %v757 = vsel %vm756, %v407, -inf
        %758 = vmax.xlane.f32.xlu0 %v757
        %v759 = vpop.xlane.xlu0 %758
        %v760 = vsel %vm756, %v410, -inf
        %761 = vmax.xlane.f32.xlu0 %v760
        %v762 = vpop.xlane.xlu0 %761
        %v763 = vsel %vm756, %v456, -inf
        %764 = vmax.xlane.f32.xlu0 %v763
        %v765 = vpop.xlane.xlu0 %764
        %v766 = vsel %vm756, %v459, -inf
        %767 = vmax.xlane.f32.xlu0 %v766
        %v768 = vpop.xlane.xlu0 %767
        %v769 = vsel %vm756, %v505, -inf
        %770 = vmax.xlane.f32.xlu0 %v769
        %v771 = vpop.xlane.xlu0 %770
        %v772 = vsel %vm756, %v508, -inf
        %773 = vmax.xlane.f32.xlu0 %v772
        %v774 = vpop.xlane.xlu0 %773
        %v775 = vsel %vm756, %v554, -inf
        %776 = vmax.xlane.f32.xlu0 %v775
        %v777 = vpop.xlane.xlu0 %776
        %v778 = vsel %vm756, %v557, -inf
        %779 = vmax.xlane.f32.xlu0 %v778
        %v780 = vpop.xlane.xlu0 %779
        %v781 = vsel %vm756, %v603, -inf
        %782 = vmax.xlane.f32.xlu0 %v781
        %v783 = vpop.xlane.xlu0 %782
        %v784 = vsel %vm756, %v606, -inf
        %785 = vmax.xlane.f32.xlu0 %v784
        %v786 = vpop.xlane.xlu0 %785
        %v787 = vsel %vm756, %v652, -inf
        %788 = vmax.xlane.f32.xlu0 %v787
        %v789 = vpop.xlane.xlu0 %788
        %v790 = vsel %vm756, %v655, -inf
        %791 = vmax.xlane.f32.xlu0 %v790
        %v792 = vpop.xlane.xlu0 %791
        %v793 = vsel %vm756, %v701, -inf
        %794 = vmax.xlane.f32.xlu0 %v793
        %v795 = vpop.xlane.xlu0 %794
        %v796 = vsel %vm756, %v704, -inf
        %797 = vmax.xlane.f32.xlu0 %v796
        %v798 = vpop.xlane.xlu0 %797
        %v799 = vsel %vm756, %v750, -inf
        %800 = vmax.xlane.f32.xlu0 %v799
        %v801 = vpop.xlane.xlu0 %800
        %v802 = vsel %vm756, %v753, -inf
        %803 = vmax.xlane.f32.xlu0 %v802
        %v804 = vpop.xlane.xlu0 %803
        %v805 = vsub.f32 %v407, %v759
        %v806 = vsub.f32 %v410, %v762
        %v807 = vsub.f32 %v456, %v765
        %v808 = vsub.f32 %v459, %v768
        %v809 = vsub.f32 %v505, %v771
        %v810 = vsub.f32 %v508, %v774
        %v811 = vsub.f32 %v554, %v777
        %v812 = vsub.f32 %v557, %v780
        %v813 = vsub.f32 %v603, %v783
        %v814 = vsub.f32 %v606, %v786
        %v815 = vsub.f32 %v652, %v789
        %v816 = vsub.f32 %v655, %v792
        %v817 = vsub.f32 %v701, %v795
        %v818 = vsub.f32 %v704, %v798
        %v819 = vsub.f32 %v750, %v801
        %v820 = vsub.f32 %v753, %v804
        %v821 = vmul.f32 %v805, 1.442695
        %v822 = vpow.pop %v821
        %v823 = vmul.f32 %v806, 1.442695
        %v824 = vpow.pop %v823
        %v825 = vmul.f32 %v807, 1.442695
        %v826 = vpow.pop %v825
        %v827 = vmul.f32 %v808, 1.442695
        %v828 = vpow.pop %v827
        %v829 = vmul.f32 %v809, 1.442695
        %v830 = vpow.pop %v829
        %v831 = vmul.f32 %v810, 1.442695
        %v832 = vpow.pop %v831
        %v833 = vmul.f32 %v811, 1.442695
        %v834 = vpow.pop %v833
        %v835 = vmul.f32 %v812, 1.442695
        %v836 = vpow.pop %v835
        %v837 = vmul.f32 %v813, 1.442695
        %v838 = vpow.pop %v837
        %v839 = vmul.f32 %v814, 1.442695
        %v840 = vpow.pop %v839
        %v841 = vmul.f32 %v815, 1.442695
        %v842 = vpow.pop %v841
        %v843 = vmul.f32 %v816, 1.442695
        %v844 = vpow.pop %v843
        %v845 = vmul.f32 %v817, 1.442695
        %v846 = vpow.pop %v845
        %v847 = vmul.f32 %v818, 1.442695
        %v848 = vpow.pop %v847
        %v849 = vmul.f32 %v819, 1.442695
        %v850 = vpow.pop %v849
        %v851 = vmul.f32 %v820, 1.442695
        %v852 = vpow.pop %v851
        %v853 = vsel %vm756, %v822, 0.0
        %854 = vadd.xlane.f32.xlu0 %v853
        %v855 = vpop.xlane.xlu0 %854
        %v856 = vsel %vm756, %v824, 0.0
        %857 = vadd.xlane.f32.xlu0 %v856
        %v858 = vpop.xlane.xlu0 %857
        %v859 = vsel %vm756, %v826, 0.0
        %860 = vadd.xlane.f32.xlu0 %v859
        %v861 = vpop.xlane.xlu0 %860
        %v862 = vsel %vm756, %v828, 0.0
        %863 = vadd.xlane.f32.xlu0 %v862
        %v864 = vpop.xlane.xlu0 %863
        %v865 = vsel %vm756, %v830, 0.0
        %866 = vadd.xlane.f32.xlu0 %v865
        %v867 = vpop.xlane.xlu0 %866
        %v868 = vsel %vm756, %v832, 0.0
        %869 = vadd.xlane.f32.xlu0 %v868
        %v870 = vpop.xlane.xlu0 %869
        %v871 = vsel %vm756, %v834, 0.0
        %872 = vadd.xlane.f32.xlu0 %v871
        %v873 = vpop.xlane.xlu0 %872
        %v874 = vsel %vm756, %v836, 0.0
        %875 = vadd.xlane.f32.xlu0 %v874
        %v876 = vpop.xlane.xlu0 %875
        %v877 = vsel %vm756, %v838, 0.0
        %878 = vadd.xlane.f32.xlu0 %v877
        %v879 = vpop.xlane.xlu0 %878
        %v880 = vsel %vm756, %v840, 0.0
        %881 = vadd.xlane.f32.xlu0 %v880
        %v882 = vpop.xlane.xlu0 %881
        %v883 = vsel %vm756, %v842, 0.0
        %884 = vadd.xlane.f32.xlu0 %v883
        %v885 = vpop.xlane.xlu0 %884
        %v886 = vsel %vm756, %v844, 0.0
        %887 = vadd.xlane.f32.xlu0 %v886
        %v888 = vpop.xlane.xlu0 %887
        %v889 = vsel %vm756, %v846, 0.0
        %890 = vadd.xlane.f32.xlu0 %v889
        %v891 = vpop.xlane.xlu0 %890
        %v892 = vsel %vm756, %v848, 0.0
        %893 = vadd.xlane.f32.xlu0 %v892
        %v894 = vpop.xlane.xlu0 %893
        %v895 = vsel %vm756, %v850, 0.0
        %896 = vadd.xlane.f32.xlu0 %v895
        %v897 = vpop.xlane.xlu0 %896
        %v898 = vsel %vm756, %v852, 0.0
        %899 = vadd.xlane.f32.xlu0 %v898
        %v900 = vpop.xlane.xlu0 %899
        %v901 = vrcp.pop %v855
        %v902 = vrcp.pop %v858
        %v903 = vrcp.pop %v861
        %v904 = vrcp.pop %v864
        %v905 = vrcp.pop %v867
        %v906 = vrcp.pop %v870
        %v907 = vrcp.pop %v873
        %v908 = vrcp.pop %v876
        %v909 = vrcp.pop %v879
        %v910 = vrcp.pop %v882
        %v911 = vrcp.pop %v885
        %v912 = vrcp.pop %v888
        %v913 = vrcp.pop %v891
        %v914 = vrcp.pop %v894
        %v915 = vrcp.pop %v897
        %v916 = vrcp.pop %v900
        %v917 = vmul.f32 %v822, %v901
        %v918 = vmul.f32 %v824, %v902
        %v919 = vmul.f32 %v826, %v903
        %v920 = vmul.f32 %v828, %v904
        %v921 = vmul.f32 %v830, %v905
        %v922 = vmul.f32 %v832, %v906
        %v923 = vmul.f32 %v834, %v907
        %v924 = vmul.f32 %v836, %v908
        %v925 = vmul.f32 %v838, %v909
        %v926 = vmul.f32 %v840, %v910
        %v927 = vmul.f32 %v842, %v911
        %v928 = vmul.f32 %v844, %v912
        %v929 = vmul.f32 %v846, %v913
        %v930 = vmul.f32 %v848, %v914
        %v931 = vmul.f32 %v850, %v915
        %v932 = vmul.f32 %v852, %v916
        %v933 = vpack.c.bf16 %v918, %v917
        %v934 = vpack.c.bf16 %v920, %v919
        %v935 = vpack.c.bf16 %v922, %v921
        %v936 = vpack.c.bf16 %v924, %v923
        %v937 = vpack.c.bf16 %v926, %v925
        %v938 = vpack.c.bf16 %v928, %v927
        %v939 = vpack.c.bf16 %v930, %v929
        %v940 = vpack.c.bf16 %v932, %v931
        %941 = vrot.lane.b32.xlu0 %v347, 64
        %v942 = vpop.permute.xlu0 %941
        %v945 = vsel %vm756, %v933, 0
        %947 = vmatprep.subr.bf16.mxu0 0
        %948 = vmatpush1.bf16.msra.mxu0 %v942
        %949 = vmatprep.subr.bf16.mxu0 0
        %950 = vmatpush1.bf16.msra.mxu0 0
        %951 = vmatprep.subr.bf16.mxu0 0
        %952 = vmatpush1.bf16.msra.mxu0 0
        %953 = vmatprep.subr.bf16.mxu0 0
        %954 = vmatpush1.bf16.msra.mxu0 0
        %955 = vmatprep.subr.bf16.mxu0 0
        %956 = vmatpush1.bf16.msra.mxu0 0
        %957 = vmatprep.subr.bf16.mxu0 0
        %958 = vmatpush1.bf16.msra.mxu0 0
        %959 = vmatprep.subr.bf16.mxu0 0
        %960 = vmatpush1.bf16.msra.mxu0 0
        %961 = vmatprep.subr.bf16.mxu0 0
        %962 = vmatpush1.bf16.msra.mxu0 0
        %963 = vmatprep.subr.bf16.mxu0 0
        %964 = vmatpush1.bf16.msra.mxu0 0
        %965 = vmatprep.subr.bf16.mxu0 0
        %966 = vmatpush1.bf16.msra.mxu0 0
        %967 = vmatprep.subr.bf16.mxu0 0
        %968 = vmatpush1.bf16.msra.mxu0 0
        %969 = vmatprep.subr.bf16.mxu0 0
        %970 = vmatpush1.bf16.msra.mxu0 0
        %971 = vmatprep.subr.bf16.mxu0 0
        %972 = vmatpush1.bf16.msra.mxu0 0
        %973 = vmatprep.subr.bf16.mxu0 0
        %974 = vmatpush1.bf16.msra.mxu0 0
        %975 = vmatprep.subr.bf16.mxu0 0
        %976 = vmatpush1.bf16.msra.mxu0 0
        %977 = vmatprep.subr.bf16.mxu0 0
        %978 = vmatpush1.bf16.msra.mxu0 0
        %979 = vmatprep.mubr.bf16.mxu0 0
        %980 = vmatmul.mubr.bf16.gmra.mrb[0].mxu0 %v945
        %v981 = vpop.f32.mrb[0].mxu0
        %v982 = vadd.f32 0.0, %v981
        %v983 = vpop.f32.mrb[0].mxu0
        %v984 = vpop.f32.mrb[0].mxu0
        %v985 = vadd.f32 0.0, %v984
        %v986 = vpop.f32.mrb[0].mxu0
        %987 = vdwg.mxu0
        %988 = vrot.lane.b32.xlu0 %v348, 64
        %v989 = vpop.permute.xlu0 %988
        %v992 = vsel %vm756, %v934, 0
        %994 = vmatprep.subr.bf16.mxu0 0
        %995 = vmatpush1.bf16.msra.mxu0 %v989
        %996 = vmatprep.subr.bf16.mxu0 0
        %997 = vmatpush1.bf16.msra.mxu0 0
        %998 = vmatprep.subr.bf16.mxu0 0
        %999 = vmatpush1.bf16.msra.mxu0 0
        %1000 = vmatprep.subr.bf16.mxu0 0
        %1001 = vmatpush1.bf16.msra.mxu0 0
        %1002 = vmatprep.subr.bf16.mxu0 0
        %1003 = vmatpush1.bf16.msra.mxu0 0
        %1004 = vmatprep.subr.bf16.mxu0 0
        %1005 = vmatpush1.bf16.msra.mxu0 0
        %1006 = vmatprep.subr.bf16.mxu0 0
        %1007 = vmatpush1.bf16.msra.mxu0 0
        %1008 = vmatprep.subr.bf16.mxu0 0
        %1009 = vmatpush1.bf16.msra.mxu0 0
        %1010 = vmatprep.subr.bf16.mxu0 0
        %1011 = vmatpush1.bf16.msra.mxu0 0
        %1012 = vmatprep.subr.bf16.mxu0 0
        %1013 = vmatpush1.bf16.msra.mxu0 0
        %1014 = vmatprep.subr.bf16.mxu0 0
        %1015 = vmatpush1.bf16.msra.mxu0 0
        %1016 = vmatprep.subr.bf16.mxu0 0
        %1017 = vmatpush1.bf16.msra.mxu0 0
        %1018 = vmatprep.subr.bf16.mxu0 0
        %1019 = vmatpush1.bf16.msra.mxu0 0
        %1020 = vmatprep.subr.bf16.mxu0 0
        %1021 = vmatpush1.bf16.msra.mxu0 0
        %1022 = vmatprep.subr.bf16.mxu0 0
        %1023 = vmatpush1.bf16.msra.mxu0 0
        %1024 = vmatprep.subr.bf16.mxu0 0
        %1025 = vmatpush1.bf16.msra.mxu0 0
        %1026 = vmatprep.mubr.bf16.mxu0 0
        %1027 = vmatmul.mubr.bf16.gmra.mrb[0].mxu0 %v992
        %v1028 = vpop.f32.mrb[0].mxu0
        %v1029 = vadd.f32 0.0, %v1028
        %v1030 = vpop.f32.mrb[0].mxu0
        %v1031 = vpop.f32.mrb[0].mxu0
        %v1032 = vadd.f32 0.0, %v1031
        %v1033 = vpop.f32.mrb[0].mxu0
        %1034 = vdwg.mxu0
        %1035 = vrot.lane.b32.xlu0 %v352, 64
        %v1036 = vpop.permute.xlu0 %1035
        %v1039 = vsel %vm756, %v935, 0
        %1041 = vmatprep.subr.bf16.mxu0 0
        %1042 = vmatpush1.bf16.msra.mxu0 %v1036
        %1043 = vmatprep.subr.bf16.mxu0 0
        %1044 = vmatpush1.bf16.msra.mxu0 0
        %1045 = vmatprep.subr.bf16.mxu0 0
        %1046 = vmatpush1.bf16.msra.mxu0 0
        %1047 = vmatprep.subr.bf16.mxu0 0
        %1048 = vmatpush1.bf16.msra.mxu0 0
        %1049 = vmatprep.subr.bf16.mxu0 0
        %1050 = vmatpush1.bf16.msra.mxu0 0
        %1051 = vmatprep.subr.bf16.mxu0 0
        %1052 = vmatpush1.bf16.msra.mxu0 0
        %1053 = vmatprep.subr.bf16.mxu0 0
        %1054 = vmatpush1.bf16.msra.mxu0 0
        %1055 = vmatprep.subr.bf16.mxu0 0
        %1056 = vmatpush1.bf16.msra.mxu0 0
        %1057 = vmatprep.subr.bf16.mxu0 0
        %1058 = vmatpush1.bf16.msra.mxu0 0
        %1059 = vmatprep.subr.bf16.mxu0 0
        %1060 = vmatpush1.bf16.msra.mxu0 0
        %1061 = vmatprep.subr.bf16.mxu0 0
        %1062 = vmatpush1.bf16.msra.mxu0 0
        %1063 = vmatprep.subr.bf16.mxu0 0
        %1064 = vmatpush1.bf16.msra.mxu0 0
        %1065 = vmatprep.subr.bf16.mxu0 0
        %1066 = vmatpush1.bf16.msra.mxu0 0
        %1067 = vmatprep.subr.bf16.mxu0 0
        %1068 = vmatpush1.bf16.msra.mxu0 0
        %1069 = vmatprep.subr.bf16.mxu0 0
        %1070 = vmatpush1.bf16.msra.mxu0 0
        %1071 = vmatprep.subr.bf16.mxu0 0
        %1072 = vmatpush1.bf16.msra.mxu0 0
        %1073 = vmatprep.mubr.bf16.mxu0 0
        %1074 = vmatmul.mubr.bf16.gmra.mrb[0].mxu0 %v1039
        %v1075 = vpop.f32.mrb[0].mxu0
        %v1076 = vadd.f32 0.0, %v1075
        %v1077 = vpop.f32.mrb[0].mxu0
        %v1078 = vpop.f32.mrb[0].mxu0
        %v1079 = vadd.f32 0.0, %v1078
        %v1080 = vpop.f32.mrb[0].mxu0
        %1081 = vdwg.mxu0
        %1082 = vrot.lane.b32.xlu0 %v354, 64
        %v1083 = vpop.permute.xlu0 %1082
        %v1086 = vsel %vm756, %v936, 0
        %1088 = vmatprep.subr.bf16.mxu0 0
        %1089 = vmatpush1.bf16.msra.mxu0 %v1083
        %1090 = vmatprep.subr.bf16.mxu0 0
        %1091 = vmatpush1.bf16.msra.mxu0 0
        %1092 = vmatprep.subr.bf16.mxu0 0
        %1093 = vmatpush1.bf16.msra.mxu0 0
        %1094 = vmatprep.subr.bf16.mxu0 0
        %1095 = vmatpush1.bf16.msra.mxu0 0
        %1096 = vmatprep.subr.bf16.mxu0 0
        %1097 = vmatpush1.bf16.msra.mxu0 0
        %1098 = vmatprep.subr.bf16.mxu0 0
        %1099 = vmatpush1.bf16.msra.mxu0 0
        %1100 = vmatprep.subr.bf16.mxu0 0
        %1101 = vmatpush1.bf16.msra.mxu0 0
        %1102 = vmatprep.subr.bf16.mxu0 0
        %1103 = vmatpush1.bf16.msra.mxu0 0
        %1104 = vmatprep.subr.bf16.mxu0 0
        %1105 = vmatpush1.bf16.msra.mxu0 0
        %1106 = vmatprep.subr.bf16.mxu0 0
        %1107 = vmatpush1.bf16.msra.mxu0 0
        %1108 = vmatprep.subr.bf16.mxu0 0
        %1109 = vmatpush1.bf16.msra.mxu0 0
        %1110 = vmatprep.subr.bf16.mxu0 0
        %1111 = vmatpush1.bf16.msra.mxu0 0
        %1112 = vmatprep.subr.bf16.mxu0 0
        %1113 = vmatpush1.bf16.msra.mxu0 0
        %1114 = vmatprep.subr.bf16.mxu0 0
        %1115 = vmatpush1.bf16.msra.mxu0 0
        %1116 = vmatprep.subr.bf16.mxu0 0
        %1117 = vmatpush1.bf16.msra.mxu0 0
        %1118 = vmatprep.subr.bf16.mxu0 0
        %1119 = vmatpush1.bf16.msra.mxu0 0
        %1120 = vmatprep.mubr.bf16.mxu0 0
        %1121 = vmatmul.mubr.bf16.gmra.mrb[0].mxu0 %v1086
        %v1122 = vpop.f32.mrb[0].mxu0
        %v1123 = vadd.f32 0.0, %v1122
        %v1124 = vpop.f32.mrb[0].mxu0
        %v1125 = vpop.f32.mrb[0].mxu0
        %v1126 = vadd.f32 0.0, %v1125
        %v1127 = vpop.f32.mrb[0].mxu0
        %1128 = vdwg.mxu0
        %1129 = vrot.lane.b32.xlu0 %v356, 64
        %v1130 = vpop.permute.xlu0 %1129
        %v1133 = vsel %vm756, %v937, 0
        %1135 = vmatprep.subr.bf16.mxu0 0
        %1136 = vmatpush1.bf16.msra.mxu0 %v1130
        %1137 = vmatprep.subr.bf16.mxu0 0
        %1138 = vmatpush1.bf16.msra.mxu0 0
        %1139 = vmatprep.subr.bf16.mxu0 0
        %1140 = vmatpush1.bf16.msra.mxu0 0
        %1141 = vmatprep.subr.bf16.mxu0 0
        %1142 = vmatpush1.bf16.msra.mxu0 0
        %1143 = vmatprep.subr.bf16.mxu0 0
        %1144 = vmatpush1.bf16.msra.mxu0 0
        %1145 = vmatprep.subr.bf16.mxu0 0
        %1146 = vmatpush1.bf16.msra.mxu0 0
        %1147 = vmatprep.subr.bf16.mxu0 0
        %1148 = vmatpush1.bf16.msra.mxu0 0
        %1149 = vmatprep.subr.bf16.mxu0 0
        %1150 = vmatpush1.bf16.msra.mxu0 0
        %1151 = vmatprep.subr.bf16.mxu0 0
        %1152 = vmatpush1.bf16.msra.mxu0 0
        %1153 = vmatprep.subr.bf16.mxu0 0
        %1154 = vmatpush1.bf16.msra.mxu0 0
        %1155 = vmatprep.subr.bf16.mxu0 0
        %1156 = vmatpush1.bf16.msra.mxu0 0
        %1157 = vmatprep.subr.bf16.mxu0 0
        %1158 = vmatpush1.bf16.msra.mxu0 0
        %1159 = vmatprep.subr.bf16.mxu0 0
        %1160 = vmatpush1.bf16.msra.mxu0 0
        %1161 = vmatprep.subr.bf16.mxu0 0
        %1162 = vmatpush1.bf16.msra.mxu0 0
        %1163 = vmatprep.subr.bf16.mxu0 0
        %1164 = vmatpush1.bf16.msra.mxu0 0
        %1165 = vmatprep.subr.bf16.mxu0 0
        %1166 = vmatpush1.bf16.msra.mxu0 0
        %1167 = vmatprep.mubr.bf16.mxu0 0
        %1168 = vmatmul.mubr.bf16.gmra.mrb[0].mxu0 %v1133
        %v1169 = vpop.f32.mrb[0].mxu0
        %v1170 = vadd.f32 0.0, %v1169
        %v1171 = vpop.f32.mrb[0].mxu0
        %v1172 = vpop.f32.mrb[0].mxu0
        %v1173 = vadd.f32 0.0, %v1172
        %v1174 = vpop.f32.mrb[0].mxu0
        %1175 = vdwg.mxu0
        %1176 = vrot.lane.b32.xlu0 %v358, 64
        %v1177 = vpop.permute.xlu0 %1176
        %v1180 = vsel %vm756, %v938, 0
        %1182 = vmatprep.subr.bf16.mxu0 0
        %1183 = vmatpush1.bf16.msra.mxu0 %v1177
        %1184 = vmatprep.subr.bf16.mxu0 0
        %1185 = vmatpush1.bf16.msra.mxu0 0
        %1186 = vmatprep.subr.bf16.mxu0 0
        %1187 = vmatpush1.bf16.msra.mxu0 0
        %1188 = vmatprep.subr.bf16.mxu0 0
        %1189 = vmatpush1.bf16.msra.mxu0 0
        %1190 = vmatprep.subr.bf16.mxu0 0
        %1191 = vmatpush1.bf16.msra.mxu0 0
        %1192 = vmatprep.subr.bf16.mxu0 0
        %1193 = vmatpush1.bf16.msra.mxu0 0
        %1194 = vmatprep.subr.bf16.mxu0 0
        %1195 = vmatpush1.bf16.msra.mxu0 0
        %1196 = vmatprep.subr.bf16.mxu0 0
        %1197 = vmatpush1.bf16.msra.mxu0 0
        %1198 = vmatprep.subr.bf16.mxu0 0
        %1199 = vmatpush1.bf16.msra.mxu0 0
        %1200 = vmatprep.subr.bf16.mxu0 0
        %1201 = vmatpush1.bf16.msra.mxu0 0
        %1202 = vmatprep.subr.bf16.mxu0 0
        %1203 = vmatpush1.bf16.msra.mxu0 0
        %1204 = vmatprep.subr.bf16.mxu0 0
        %1205 = vmatpush1.bf16.msra.mxu0 0
        %1206 = vmatprep.subr.bf16.mxu0 0
        %1207 = vmatpush1.bf16.msra.mxu0 0
        %1208 = vmatprep.subr.bf16.mxu0 0
        %1209 = vmatpush1.bf16.msra.mxu0 0
        %1210 = vmatprep.subr.bf16.mxu0 0
        %1211 = vmatpush1.bf16.msra.mxu0 0
        %1212 = vmatprep.subr.bf16.mxu0 0
        %1213 = vmatpush1.bf16.msra.mxu0 0
        %1214 = vmatprep.mubr.bf16.mxu0 0
        %1215 = vmatmul.mubr.bf16.gmra.mrb[0].mxu0 %v1180
        %v1216 = vpop.f32.mrb[0].mxu0
        %v1217 = vadd.f32 0.0, %v1216
        %v1218 = vpop.f32.mrb[0].mxu0
        %v1219 = vpop.f32.mrb[0].mxu0
        %v1220 = vadd.f32 0.0, %v1219
        %v1221 = vpop.f32.mrb[0].mxu0
        %1222 = vdwg.mxu0
        %1223 = vrot.lane.b32.xlu0 %v360, 64
        %v1224 = vpop.permute.xlu0 %1223
        %v1227 = vsel %vm756, %v939, 0
        %1229 = vmatprep.subr.bf16.mxu0 0
        %1230 = vmatpush1.bf16.msra.mxu0 %v1224
        %1231 = vmatprep.subr.bf16.mxu0 0
        %1232 = vmatpush1.bf16.msra.mxu0 0
        %1233 = vmatprep.subr.bf16.mxu0 0
        %1234 = vmatpush1.bf16.msra.mxu0 0
        %1235 = vmatprep.subr.bf16.mxu0 0
        %1236 = vmatpush1.bf16.msra.mxu0 0
        %1237 = vmatprep.subr.bf16.mxu0 0
        %1238 = vmatpush1.bf16.msra.mxu0 0
        %1239 = vmatprep.subr.bf16.mxu0 0
        %1240 = vmatpush1.bf16.msra.mxu0 0
        %1241 = vmatprep.subr.bf16.mxu0 0
        %1242 = vmatpush1.bf16.msra.mxu0 0
        %1243 = vmatprep.subr.bf16.mxu0 0
        %1244 = vmatpush1.bf16.msra.mxu0 0
        %1245 = vmatprep.subr.bf16.mxu0 0
        %1246 = vmatpush1.bf16.msra.mxu0 0
        %1247 = vmatprep.subr.bf16.mxu0 0
        %1248 = vmatpush1.bf16.msra.mxu0 0
        %1249 = vmatprep.subr.bf16.mxu0 0
        %1250 = vmatpush1.bf16.msra.mxu0 0
        %1251 = vmatprep.subr.bf16.mxu0 0
        %1252 = vmatpush1.bf16.msra.mxu0 0
        %1253 = vmatprep.subr.bf16.mxu0 0
        %1254 = vmatpush1.bf16.msra.mxu0 0
        %1255 = vmatprep.subr.bf16.mxu0 0
        %1256 = vmatpush1.bf16.msra.mxu0 0
        %1257 = vmatprep.subr.bf16.mxu0 0
        %1258 = vmatpush1.bf16.msra.mxu0 0
        %1259 = vmatprep.subr.bf16.mxu0 0
        %1260 = vmatpush1.bf16.msra.mxu0 0
        %1261 = vmatprep.mubr.bf16.mxu0 0
        %1262 = vmatmul.mubr.bf16.gmra.mrb[0].mxu0 %v1227
        %v1263 = vpop.f32.mrb[0].mxu0
        %v1264 = vadd.f32 0.0, %v1263
        %v1265 = vpop.f32.mrb[0].mxu0
        %v1266 = vpop.f32.mrb[0].mxu0
        %v1267 = vadd.f32 0.0, %v1266
        %v1268 = vpop.f32.mrb[0].mxu0
        %1269 = vdwg.mxu0
        %1270 = vrot.lane.b32.xlu0 %v362, 64
        %v1271 = vpop.permute.xlu0 %1270
        %v1274 = vsel %vm756, %v940, 0
        %1276 = vmatprep.subr.bf16.mxu0 0
        %1277 = vmatpush1.bf16.msra.mxu0 %v1271
        %1278 = vmatprep.subr.bf16.mxu0 0
        %1279 = vmatpush1.bf16.msra.mxu0 0
        %1280 = vmatprep.subr.bf16.mxu0 0
        %1281 = vmatpush1.bf16.msra.mxu0 0
        %1282 = vmatprep.subr.bf16.mxu0 0
        %1283 = vmatpush1.bf16.msra.mxu0 0
        %1284 = vmatprep.subr.bf16.mxu0 0
        %1285 = vmatpush1.bf16.msra.mxu0 0
        %1286 = vmatprep.subr.bf16.mxu0 0
        %1287 = vmatpush1.bf16.msra.mxu0 0
        %1288 = vmatprep.subr.bf16.mxu0 0
        %1289 = vmatpush1.bf16.msra.mxu0 0
        %1290 = vmatprep.subr.bf16.mxu0 0
        %1291 = vmatpush1.bf16.msra.mxu0 0
        %1292 = vmatprep.subr.bf16.mxu0 0
        %1293 = vmatpush1.bf16.msra.mxu0 0
        %1294 = vmatprep.subr.bf16.mxu0 0
        %1295 = vmatpush1.bf16.msra.mxu0 0
        %1296 = vmatprep.subr.bf16.mxu0 0
        %1297 = vmatpush1.bf16.msra.mxu0 0
        %1298 = vmatprep.subr.bf16.mxu0 0
        %1299 = vmatpush1.bf16.msra.mxu0 0
        %1300 = vmatprep.subr.bf16.mxu0 0
        %1301 = vmatpush1.bf16.msra.mxu0 0
        %1302 = vmatprep.subr.bf16.mxu0 0
        %1303 = vmatpush1.bf16.msra.mxu0 0
        %1304 = vmatprep.subr.bf16.mxu0 0
        %1305 = vmatpush1.bf16.msra.mxu0 0
        %1306 = vmatprep.subr.bf16.mxu0 0
        %1307 = vmatpush1.bf16.msra.mxu0 0
        %1308 = vmatprep.mubr.bf16.mxu0 0
        %1309 = vmatmul.mubr.bf16.gmra.mrb[0].mxu0 %v1274
        %v1310 = vpop.f32.mrb[0].mxu0
        %v1311 = vadd.f32 0.0, %v1310
        %v1312 = vpop.f32.mrb[0].mxu0
        %v1313 = vpop.f32.mrb[0].mxu0
        %v1314 = vadd.f32 0.0, %v1313
        %v1315 = vpop.f32.mrb[0].mxu0
        %1316 = vdwg.mxu0
        %v1317 = vpack.c.bf16 %v985, %v982
        %v1318 = vpack.c.bf16 %v1032, %v1029
        %v1319 = vpack.c.bf16 %v1079, %v1076
        %v1320 = vpack.c.bf16 %v1126, %v1123
        %v1321 = vpack.c.bf16 %v1173, %v1170
        %v1322 = vpack.c.bf16 %v1220, %v1217
        %v1323 = vpack.c.bf16 %v1267, %v1264
        %v1324 = vpack.c.bf16 %v1314, %v1311
        %1327 = vrot.lane.b32.xlu0 %v1319, 8
        %v1328 = vpop.permute.xlu0 %1327
        %1329 = vrot.lane.b32.xlu0 %v1320, 8
        %v1330 = vpop.permute.xlu0 %1329
        %1333 = vrot.lane.b32.xlu0 %v1321, 16
        %v1334 = vpop.permute.xlu0 %1333
        %1335 = vrot.lane.b32.xlu0 %v1322, 16
        %v1336 = vpop.permute.xlu0 %1335
        %1339 = vrot.lane.b32.xlu0 %v1323, 24
        %v1340 = vpop.permute.xlu0 %1339
        %1341 = vrot.lane.b32.xlu0 %v1324, 24
        %v1342 = vpop.permute.xlu0 %1341
        %v1345 = vsel %vm365, %v1317, %v1328
        %v1348 = vsel %vm365, %v1318, %v1330
        %v1350 = vsel %vm756, %v1345, %v1334
        %v1352 = vsel %vm756, %v1348, %v1336
        %vm1353 = vcmask 195584
        %v1355 = vsel %vm1353, %v1350, %v1340
        %v1357 = vsel %vm1353, %v1352, %v1342
        %v1358 = vld [vmem:[#allocation7] sm:$0xf]
        %v1359 = vld [vmem:[#allocation7 + $0x4] sm:$0xf]
        %v1360 = vld [vmem:[#allocation7 + $0x8] sm:$0xf]
        %v1361 = vld [vmem:[#allocation7 + $0xc] sm:$0xf]
        %v1362 = vld [vmem:[#allocation8] sm:$0x1]
        %v1364 = vlaneseq
        %v1365 = vshrl.u32 %v1364, 7
        %v1366 = vsub.s32 0, %v1365
        %v1367 = vrot.slane %v1362, %v1366
        %v1373 = vunpack.c.l.b16 %v1358
        %v1374 = vunpack.c.l.b16 %v1359
        %v1375 = vunpack.c.l.b16 %v1360
        %v1376 = vunpack.c.l.b16 %v1361
        %v1377 = vpack.c.b16 %v1374, %v1373
        %v1378 = vpack.c.b16 %v1376, %v1375
        %v1381 = vsel %vm291, %v1355, 0
        %v1383 = vsel %vm291, %v1357, 0
        %1385 = vmatprep.subr.bf16.mxu0 0
        %1386 = vmatpush1.bf16.msra.mxu0 %v1377
        %1387 = vmatprep.subr.bf16.mxu0 0
        %1388 = vmatpush1.bf16.msra.mxu0 %v1378
        %1389 = vmatprep.subr.bf16.mxu0 0
        %1390 = vmatpush1.bf16.msra.mxu0 0
        %1391 = vmatprep.subr.bf16.mxu0 0
        %1392 = vmatpush1.bf16.msra.mxu0 0
        %1393 = vmatprep.subr.bf16.mxu0 0
        %1394 = vmatpush1.bf16.msra.mxu0 0
        %1395 = vmatprep.subr.bf16.mxu0 0
        %1396 = vmatpush1.bf16.msra.mxu0 0
        %1397 = vmatprep.subr.bf16.mxu0 0
        %1398 = vmatpush1.bf16.msra.mxu0 0
        %1399 = vmatprep.subr.bf16.mxu0 0
        %1400 = vmatpush1.bf16.msra.mxu0 0
        %1401 = vmatprep.subr.bf16.mxu0 0
        %1402 = vmatpush1.bf16.msra.mxu0 0
        %1403 = vmatprep.subr.bf16.mxu0 0
        %1404 = vmatpush1.bf16.msra.mxu0 0
        %1405 = vmatprep.subr.bf16.mxu0 0
        %1406 = vmatpush1.bf16.msra.mxu0 0
        %1407 = vmatprep.subr.bf16.mxu0 0
        %1408 = vmatpush1.bf16.msra.mxu0 0
        %1409 = vmatprep.subr.bf16.mxu0 0
        %1410 = vmatpush1.bf16.msra.mxu0 0
        %1411 = vmatprep.subr.bf16.mxu0 0
        %1412 = vmatpush1.bf16.msra.mxu0 0
        %1413 = vmatprep.subr.bf16.mxu0 0
        %1414 = vmatpush1.bf16.msra.mxu0 0
        %1415 = vmatprep.subr.bf16.mxu0 0
        %1416 = vmatpush1.bf16.msra.mxu0 0
        %1417 = vmatprep.mubr.bf16.mxu0 0
        %1418 = vmatmul.mubr.bf16.gmra.mrb[0].mxu0 %v1381
        %v1419 = vpop.f32.mrb[0].mxu0
        %v1420 = vadd.f32 %v1367, %v1419
        %v1421 = vpop.f32.mrb[0].mxu0
        %v1422 = vpop.f32.mrb[0].mxu0
        %v1423 = vadd.f32 %v1367, %v1422
        %v1424 = vpop.f32.mrb[0].mxu0
        %1425 = vmatprep.mubr.bf16.mxu0 0
        %1426 = vmatmul.mubr.bf16.gmra.mrb[0].mxu0 %v1383
        %v1427 = vpop.f32.mrb[0].mxu0
        %v1428 = vadd.f32 %v1367, %v1427
        %v1429 = vpop.f32.mrb[0].mxu0
        %v1430 = vpop.f32.mrb[0].mxu0
        %v1431 = vadd.f32 %v1367, %v1430
        %v1432 = vpop.f32.mrb[0].mxu0
        %1433 = vdwg.mxu0
        %1434 = vst.msk [vmem:[%s257] sm:$0xff] %vm291, %v1420
        %1435 = vst.msk [vmem:[%s257 + $0x8] sm:$0xff] %vm291, %v1423
        %1436 = vst.msk [vmem:[%s257 + $0x10] sm:$0xff] %vm291, %v1428
        %1437 = vst.msk [vmem:[%s257 + $0x18] sm:$0xff] %vm291, %v1431
        %s1438 = sand.u32 %s120, 1
        %s1439 = scalar_lea.sflag [#allocation4], %s1438
        %s1440 = sand.u32 %s120, 1
        %s1441 = smul.addr %s1440, 32
        %s1442 = scalar_lea.vmem [#allocation10], %s1441
        // Predicated region
        $region53: #{tpu_custom_call.1} parent=35 // pred_check
          %p1443 = pneg %p130
        $region54: #{tpu_custom_call.1} parent=35 // pred_check_branch
          %1445 = sbr.rel (%p1443) target = $region56
        $region55: #{tpu_custom_call.1} parent=35 // pred_region
          %s1446 = smul.u32 4, %s23
          %s1448 = ssub.s32 512, 512
          %1449 = vsyncadd %s1439, %s1448
          %s1450 = smul.addr %s1446, 128
          %s1451 = scalar_lea.hbm %s4, %s1450
          %s1452 = sshll.u32 %s1442, 4
          %s1453 = int_to_ptr.vmem [resolvable:$true] %s1452
          %1458 = dma.vmem_to_hbm [thread:$0]  %s1453, 512, %s1451, %s1439, 128, 128, 8
        $region56: #{tpu_custom_call.1} parent=35 // pred_fallthru
          _
      $region36: #{tpu_custom_call.1} parent=5 // pred_fallthru
        _
      %p1459 = scmp.le.s32.totalorder 2, %s18
      // Predicated region
      $region57: #{tpu_custom_call.1} parent=5 // pred_check
        %p1460 = pneg %p1459
      $region58: #{tpu_custom_call.1} parent=5 // pred_check_branch
        %1462 = sbr.rel (%p1460) target = $region60
      $region59: #{tpu_custom_call.1} parent=5 // pred_region
        %s1463 = ssub.s32 %s18, 2
        // Predicated region
        $region61: #{tpu_custom_call.1} parent=59 // pred_check
          %p1464 = pneg %p136
        $region62: #{tpu_custom_call.1} parent=59 // pred_check_branch
          %1466 = sbr.rel (%p1464) target = $region64
        $region63: #{tpu_custom_call.1} parent=59 // pred_region
          %s1467 = sand.u32 %s121, 1
          %s1468 = scalar_lea.sflag [#allocation4], %s1467
          %s1469 = sand.u32 %s121, 1
          %s1470 = smul.addr %s1469, 32
          %s1471 = scalar_lea.vmem [#allocation10], %s1470
          %1472 = dma.done %s1468, 512
        $region64: #{tpu_custom_call.1} parent=59 // pred_fallthru
          _
      $region60: #{tpu_custom_call.1} parent=5 // pred_fallthru
        _
    $region6: #{tpu_custom_call.1} parent=1 // loop_footer
      %s22 = sadd.s32 1, %s18
    $region7: #{tpu_custom_call.1} parent=1 // loop_footer_branch
      %17 = sbr.rel target = $region3
    $region8: #{tpu_custom_call.1} parent=1 // loop_exit
      _
    %1473 = vsyncpa [#allocation3], 1
    %s1474 = scalar_lea.sflag [#allocation3], 1
    %1475 = vsyncpa %s1474, 1
    %1476 = vsyncpa [#allocation6], 1
    %1477 = vsyncpa [#allocation9], 1
    %1478 = vsyncpa [#allocation4], 1
    %s1479 = scalar_lea.sflag [#allocation4], 1
    %1480 = vsyncpa %s1479, 1

</llo_original>
